<compile_context>
chip_gen: v7x
topology: tpu7x:2x2x1
jax: 0.10.0
libtpu: 0.0.40
codegen_flags: <defaults>
</compile_context>

<pallas_src>
from functools import partial

import jax
import jax.numpy as jnp
from jax.experimental import pallas as pl
from jax.experimental.pallas import tpu as pltpu


# --------------------------------------------------------------------------
# Weight preparation (tiny, hoist out of the hot path when weights are static)
# --------------------------------------------------------------------------

def prepare_weights_planar(w_re, w_im):
    """(2C, 2C) block W^T for the planar kernel: [br^T; bi^T] = W^T @ [xr^T; xi^T]."""
    return jnp.block([[w_re, -w_im], [w_im, w_re]])


def prepare_weights_interleaved(w_re, w_im):
    """(2C, 2C) block for channel-interleaved rows [r0,i0,r1,i1,...].

    Row index 2k+a (a=0:xr_k, a=1:xi_k), column index 2c+b (b=0:br_c, b=1:bi_c):
        W[2k,   2c] =  w_re[c,k]   W[2k,   2c+1] =  w_im[c,k]
        W[2k+1, 2c] = -w_im[c,k]   W[2k+1, 2c+1] =  w_re[c,k]
    (If the model has several (w_re, w_im) heads, stack their blocks along the
    output axis here instead of launching the kernel per head.)
    """
    C = w_re.shape[0]
    a0 = jnp.stack([w_re.T, w_im.T], axis=-1)     # (C, C, 2): xr rows
    a1 = jnp.stack([-w_im.T, w_re.T], axis=-1)    # (C, C, 2): xi rows
    return jnp.stack([a0, a1], axis=1).reshape(2 * C, 2 * C)


def pairsum_matrix(C, dtype=jnp.float32):
    """(2C, C) 0/1 matrix that sums adjacent (re, im) lane pairs on the MXU."""
    return jnp.repeat(jnp.eye(C, dtype=dtype), 2, axis=0)


# --------------------------------------------------------------------------
# Tile planning
# --------------------------------------------------------------------------

def _tv_cap():
    """V-tile cap (rows per grid step), per generation.  Always a 512 multiple."""
    cap = 8192
    try:
        info = pltpu.get_tpu_info()
        # v7x-class chips: 64 MiB VMEM but ~2.3x faster HBM -> per-step DMA
        # shrinks, so use bigger tiles to amortize the ~0.35us/step overhead.
        if info.vmem_capacity_bytes <= 80 * 1024 * 1024:
            cap = 16384
    except Exception:
        pass
    return cap


def _plan_v_tiles(V, cap):
    """Return (V_padded, tv, n_steps) with pipeline/megacore-friendly tiles."""
    if V <= cap:
        # Enough work for two TensorCores (v7x) -> split into 2 parallel steps.
        if V >= 4096 and V % 256 == 0:
            return V, V // 2, 2
        return V, V, 1
    # Large V: pad to a 512 multiple, then pick the largest 512-multiple
    # divisor of V_padded that is <= cap (guarantees >= 2 pipelined steps and
    # keeps the double-buffered footprint far below every VMEM limit).
    Vp = ((V + 511) // 512) * 512
    m = Vp // 512
    for d in range(min(cap // 512, m), 0, -1):
        if m % d == 0:
            tv = 512 * d
            return Vp, tv, Vp // tv
    return Vp, 512, Vp // 512  # unreachable


# --------------------------------------------------------------------------
# Kernels
# --------------------------------------------------------------------------

def _pairwise_dot_vc_kernel(x_ref, w_ref, p_ref, o_ref, *, precision):
    # x_ref : (TV, 2C) channel-interleaved input tile (stored dtype -> MXU directly)
    # w_ref : (2C, 2C) interleaved complex-linear block (resident)
    # p_ref : (2C, C)  0/1 pair-sum matrix (resident)
    # o_ref : (TV, C)  tanh(dots) tile, written straight into the (V, C) output
    x = x_ref[...]
    y = jnp.dot(x, w_ref[...], preferred_element_type=jnp.float32,
                precision=precision)                      # (TV, 2C) = [br|bi] interleaved
    prod = x.astype(jnp.float32) * y                      # VPU, f32
    dots = jnp.dot(prod, p_ref[...], preferred_element_type=jnp.float32,
                   precision=precision)                   # adjacent-pair sum -> (TV, C)
    o_ref[...] = jnp.tanh(dots).astype(o_ref.dtype)


def _pairwise_dot_planar_kernel(xt_ref, wt_ref, out_ref, *, precision):
    # xt_ref : (2C, TV) planar transposed input [xr^T ; xi^T]
    # wt_ref : (2C, 2C) fused weight block (resident)
    # out_ref: (C, TV)  tanh(dots)^T  (V on the lane axis -> unmasked stores)
    C = out_ref.shape[0]
    xt = xt_ref[...]
    y = jnp.dot(wt_ref[...], xt, preferred_element_type=jnp.float32,
                precision=precision)                      # (2C, TV) = [br^T ; bi^T]
    xf = xt.astype(jnp.float32)
    dots = xf[:C, :] * y[:C, :] + xf[C:, :] * y[C:, :]    # (C, TV)
    out_ref[...] = jnp.tanh(dots).astype(out_ref.dtype)


# --------------------------------------------------------------------------
# Wrappers
# --------------------------------------------------------------------------

def pairwise_dot(vectors, w_re, w_im, *, tv=None,
                 precision=jax.lax.Precision.HIGHEST):
    """PyTorch-layout entry point.  vectors: (V, C, 2); w_re, w_im: (C, C).

    Returns (V, C) = tanh(xr*(A_re xr - A_im xi) + xi*(A_re xi + A_im xr)),
    matching PairwiseDot.forward (linear_complex=True, bias=False).
    bf16 `vectors` is supported and halves HBM traffic (output is bf16 too).
    """
    V, C, two = vectors.shape
    assert two == 2 and w_re.shape == (C, C) and w_im.shape == (C, C)
    C2 = 2 * C

    # (V, C, 2) -> (V, 2C) is a contiguous reinterpret: zero HBM traffic.
    # De-interleaving happens on the MXU via the interleaved weight block +
    # pair-sum matmul, so the wrapper performs no layout passes at all.
    x_int = vectors.reshape(V, C2)
    w_int = prepare_weights_interleaved(w_re, w_im).astype(vectors.dtype)
    p_sum = pairsum_matrix(C)                              # f32 (tiny, exact)

    if tv is None:
        Vp, tv, n_steps = _plan_v_tiles(V, _tv_cap())
    else:
        assert V % tv == 0 and (tv == V or tv % 128 == 0)
        Vp, n_steps = V, V // tv
    if Vp != V:  # rare: large unaligned V -> zero rows (tanh(0)=0), sliced off below
        x_int = jnp.pad(x_int, ((0, Vp - V), (0, 0)))

    isz = jnp.dtype(vectors.dtype).itemsize
    cost = pl.CostEstimate(
        flops=2 * Vp * C2 * C2 + 2 * Vp * C2 * C + Vp * C2,
        transcendentals=Vp * C,
        bytes_accessed=Vp * C2 * isz + Vp * C * isz + C2 * C2 * isz + C2 * C * 4,
    )

    out = pl.pallas_call(
        partial(_pairwise_dot_vc_kernel, precision=precision),
        out_shape=jax.ShapeDtypeStruct((Vp, C), vectors.dtype),
        grid_spec=pltpu.PrefetchScalarGridSpec(
            num_scalar_prefetch=0,
            grid=(n_steps,),
            in_specs=[
                pl.BlockSpec((tv, C2), lambda i: (i, 0)),   # streamed input rows
                pl.BlockSpec((C2, C2), lambda i: (0, 0)),   # resident weight block
                pl.BlockSpec((C2, C), lambda i: (0, 0)),    # resident pair-sum block
            ],
            out_specs=pl.BlockSpec((tv, C), lambda i: (i, 0)),
        ),
        compiler_params=pltpu.CompilerParams(
            dimension_semantics=("parallel",) if n_steps > 1 else ("arbitrary",)),
        cost_estimate=cost,
    )(x_int, w_int, p_sum)

    return out if Vp == V else out[:V]


def pairwise_dot_planar(xt, wt_block, *, tv=None, out_dtype=None,
                        precision=jax.lax.Precision.HIGHEST):
    """Lane-dense fast path.  xt: (2C, V) planar [xr^T ; xi^T];
    wt_block: (2C, 2C) from prepare_weights_planar.  Returns (C, V)."""
    C2, V = xt.shape
    C = C2 // 2
    if out_dtype is None:
        out_dtype = xt.dtype
    wt_block = wt_block.astype(xt.dtype)

    if tv is None:
        Vp, tv, n_steps = _plan_v_tiles(V, _tv_cap())
    else:
        assert V % tv == 0 and (tv == V or tv % 128 == 0)
        Vp, n_steps = V, V // tv
    if Vp != V:
        xt = jnp.pad(xt, ((0, 0), (0, Vp - V)))

    isz = jnp.dtype(xt.dtype).itemsize
    osz = jnp.dtype(out_dtype).itemsize
    cost = pl.CostEstimate(
        flops=2 * Vp * C2 * C2 + 3 * Vp * C,
        transcendentals=Vp * C,
        bytes_accessed=Vp * C2 * isz + C2 * C2 * isz + Vp * C * osz,
    )

    out = pl.pallas_call(
        partial(_pairwise_dot_planar_kernel, precision=precision),
        out_shape=jax.ShapeDtypeStruct((C, Vp), out_dtype),
        grid_spec=pltpu.PrefetchScalarGridSpec(
            num_scalar_prefetch=0,
            grid=(n_steps,),
            in_specs=[
                pl.BlockSpec((C2, tv), lambda i: (0, i)),   # x^T tiles (lane-dense)
                pl.BlockSpec((C2, C2), lambda i: (0, 0)),   # resident weight block
            ],
            out_specs=pl.BlockSpec((C, tv), lambda i: (0, i)),
        ),
        compiler_params=pltpu.CompilerParams(
            dimension_semantics=("parallel",) if n_steps > 1 else ("arbitrary",)),
        cost_estimate=cost,
    )(xt, wt_block)

    return out if Vp == V else out[:, :V]


# --------------------------------------------------------------------------
# Pure-JAX reference (mirrors the PyTorch forward; HIGHEST so it is f32-exact)
# --------------------------------------------------------------------------

def pairwise_dot_ref(vectors, w_re, w_im):
    pr = jax.lax.Precision.HIGHEST
    xr = vectors[..., 0]
    xi = vectors[..., 1]
    b_real = jnp.dot(xr, w_re.T, precision=pr) - jnp.dot(xi, w_im.T, precision=pr)
    b_imag = jnp.dot(xi, w_re.T, precision=pr) + jnp.dot(xr, w_im.T, precision=pr)
    return jnp.tanh(xr * b_real + xi * b_imag)


if __name__ == "__main__":
    V, C = 128, 32          # small: 128 vectors, C_inout = 32

    key = jax.random.PRNGKey(0)
    k_x, k_re, k_im = jax.random.split(key, 3)

    vectors = jax.random.normal(k_x, (V, C, 2), dtype=jnp.float32)
    # nn.Linear default init ~ U(-1/sqrt(C), 1/sqrt(C)); bias=False in the module.
    bound = 1.0 / jnp.sqrt(jnp.float32(C))
    w_re = jax.random.uniform(k_re, (C, C), jnp.float32, -bound, bound)
    w_im = jax.random.uniform(k_im, (C, C), jnp.float32, -bound, bound)

    ref = pairwise_dot_ref(vectors, w_re, w_im)

    # 1) PyTorch-layout entry point: no wrapper transposes, f32, HIGHEST precision.
    out = jax.block_until_ready(jax.jit(pairwise_dot)(vectors, w_re, w_im))
    assert out.shape == (V, C)
    assert jnp.allclose(out, ref, atol=1e-5, rtol=1e-5), "mismatch vs reference (f32)"

    # 2) Lane-dense planar fast path (for callers that already hold (2C, V) data).
    xt = jnp.transpose(vectors, (2, 1, 0)).reshape(2 * C, V)
    wt_block = prepare_weights_planar(w_re, w_im)
    out_cv = jax.block_until_ready(jax.jit(pairwise_dot_planar)(xt, wt_block))
    assert jnp.allclose(out_cv.T, ref, atol=1e-5, rtol=1e-5), "mismatch (planar path)"

    # 3) bf16 storage path: halves HBM traffic on this bandwidth-bound op.
    vec_bf16 = vectors.astype(jnp.bfloat16)
    out_bf16 = jax.block_until_ready(jax.jit(pairwise_dot)(vec_bf16, w_re, w_im))
    ref_bf16 = pairwise_dot_ref(vec_bf16.astype(jnp.float32), w_re, w_im)
    assert jnp.allclose(out_bf16.astype(jnp.float32), ref_bf16,
                        atol=5e-2, rtol=5e-2), "mismatch (bf16 path)"

    print("KERNEL_OK")
</pallas_src>

<mosaic_0001>
module attributes {stable_mosaic.version = 11 : i64} {
  func.func @_pairwise_dot_vc_kernel(%arg0: i32, %arg1: memref<128x64xf32, #tpu.memory_space<vmem>>, %arg2: memref<64x64xf32, #tpu.memory_space<vmem>>, %arg3: memref<64x32xf32, #tpu.memory_space<vmem>>, %arg4: memref<128x32xf32, #tpu.memory_space<vmem>>) attributes {dimension_semantics = [#tpu.dimension_semantics<arbitrary>], iteration_bounds = array<i64: 1>, scalar_prefetch = 0 : i64, scratch_operands = 0 : i64, tpu.core_type = #tpu.core_type<tc>, window_params = [{transform_indices = @transform_0, window_bounds = array<i64: 128, 64>}, {pipeline_mode = #tpu.pipeline_mode<synchronous>, transform_indices = @transform_1, window_bounds = array<i64: 64, 64>}, {pipeline_mode = #tpu.pipeline_mode<synchronous>, transform_indices = @transform_2, window_bounds = array<i64: 64, 32>}, {transform_indices = @transform_3, window_bounds = array<i64: 128, 32>}]} {
    %c0 = arith.constant 0 : index
    %c0_0 = arith.constant 0 : index
    %0 = vector.load %arg1[%c0, %c0_0] : memref<128x64xf32, #tpu.memory_space<vmem>>, vector<128x64xf32>
    %c0_1 = arith.constant 0 : index
    %c0_2 = arith.constant 0 : index
    %1 = vector.load %arg2[%c0_1, %c0_2] : memref<64x64xf32, #tpu.memory_space<vmem>>, vector<64x64xf32>
    %cst = arith.constant dense<0.000000e+00> : vector<128x64xf32>
    %2 = tpu.matmul %0, %1, %cst {dimension_numbers = #tpu.dot_dimension_numbers<[1], [0], [0], [1], [0, 0, 1, 1], [], []>, precision = #tpu.contract_precision<fp32>} : vector<128x64xf32>, vector<64x64xf32>, vector<128x64xf32> -> vector<128x64xf32>
    %3 = arith.mulf %0, %2 : vector<128x64xf32>
    %c0_3 = arith.constant 0 : index
    %c0_4 = arith.constant 0 : index
    %4 = vector.load %arg3[%c0_3, %c0_4] : memref<64x32xf32, #tpu.memory_space<vmem>>, vector<64x32xf32>
    %cst_5 = arith.constant dense<0.000000e+00> : vector<128x32xf32>
    %5 = tpu.matmul %3, %4, %cst_5 {dimension_numbers = #tpu.dot_dimension_numbers<[1], [0], [0], [1], [0, 0, 1, 1], [], []>, precision = #tpu.contract_precision<fp32>} : vector<128x64xf32>, vector<64x32xf32>, vector<128x32xf32> -> vector<128x32xf32>
    %6 = math.tanh %5 : vector<128x32xf32>
    %c0_6 = arith.constant 0 : index
    %c0_7 = arith.constant 0 : index
    %7 = vector.load %arg4[%c0_6, %c0_7] : memref<128x32xf32, #tpu.memory_space<vmem>>, vector<128x32xf32>
    tpu.vector_store %arg4[%c0_6, %c0_7], %6 {strides = array<i32>} : memref<128x32xf32, #tpu.memory_space<vmem>>, vector<128x32xf32>,
    return
  }
  func.func @transform_0(%arg0: i32) -> (i32, i32) {
    %c0_i32 = arith.constant 0 : i32
    %c0_i32_0 = arith.constant 0 : i32
    return %arg0, %c0_i32 : i32, i32
  }
  func.func @transform_1(%arg0: i32) -> (i32, i32) {
    %c0_i32 = arith.constant 0 : i32
    %c0_i32_0 = arith.constant 0 : i32
    %c0_i32_1 = arith.constant 0 : i32
    return %c0_i32, %c0_i32_0 : i32, i32
  }
  func.func @transform_2(%arg0: i32) -> (i32, i32) {
    %c0_i32 = arith.constant 0 : i32
    %c0_i32_0 = arith.constant 0 : i32
    %c0_i32_1 = arith.constant 0 : i32
    return %c0_i32, %c0_i32_0 : i32, i32
  }
  func.func @transform_3(%arg0: i32) -> (i32, i32) {
    %c0_i32 = arith.constant 0 : i32
    %c0_i32_0 = arith.constant 0 : i32
    return %arg0, %c0_i32 : i32, i32
  }
}

</mosaic_0001>

<llo_original>
// kernel: pairwise_dot.1
$region0: #{pairwise_dot.1}
  #allocation0 [shape = 'u32[]', space=smem, size = 0x4, offset = 0x4, fixed_abs, tag = 'smem constant byte address 0x4 - core index']
  #allocation1 [shape = 'u32[144,128]{1,0:T(1,128)}', space=vmem, size = 0x12000, scoped, tag = 'internal scratch']
  %s0 = inlined_call_operand.vmem [shape: f32[128,64], index: 0, kind: input, shape index: {}]
  %s1 = inlined_call_operand.vmem [shape: f32[64,64], index: 1, kind: input, shape index: {}]
  %s2 = inlined_call_operand.vmem [shape: f32[64,32], index: 2, kind: input, shape index: {}]
  %s3 = inlined_call_operand.vmem [shape: f32[128,32], index: 3, kind: output, shape index: {}]
  %s4 = sld [smem:[#allocation0]]
  $region22: #{pairwise_dot.1} parent=0
    _
  %s6 = ssub.s32 1, %s4
  %s7 = scalar_select 0, %s6, %s4
  // Predicated region
  $region2: #{pairwise_dot.1} parent=0 // pred_check
    _
  $region3: #{pairwise_dot.1} parent=0 // pred_check_branch
    %9 = sbr.rel (0) target = $region5
  $region4: #{pairwise_dot.1} parent=0 // pred_region
    _
  $region5: #{pairwise_dot.1} parent=0 // pred_fallthru
    _
  // Predicated region
  $region6: #{pairwise_dot.1} parent=0 // pred_check
    _
  $region7: #{pairwise_dot.1} parent=0 // pred_check_branch
    %11 = sbr.rel (0) target = $region9
  $region8: #{pairwise_dot.1} parent=0 // pred_region
    _
  $region9: #{pairwise_dot.1} parent=0 // pred_fallthru
    _
  // Predicated region
  $region10: #{pairwise_dot.1} parent=0 // pred_check
    _
  $region11: #{pairwise_dot.1} parent=0 // pred_check_branch
    %13 = sbr.rel (0) target = $region13
  $region12: #{pairwise_dot.1} parent=0 // pred_region
    _
  $region13: #{pairwise_dot.1} parent=0 // pred_fallthru
    _
  %v14 = vld [vmem:[%s0] sm:$0xff]
  %v15 = vld [vmem:[%s0 + $0x8] sm:$0xff]
  %v16 = vld [vmem:[%s0 + $0x10] sm:$0xff]
  %v17 = vld [vmem:[%s0 + $0x18] sm:$0xff]
  %v18 = vld [vmem:[%s0 + $0x20] sm:$0xff]
  %v19 = vld [vmem:[%s0 + $0x28] sm:$0xff]
  %v20 = vld [vmem:[%s0 + $0x30] sm:$0xff]
  %v21 = vld [vmem:[%s0 + $0x38] sm:$0xff]
  %v22 = vld [vmem:[%s0 + $0x40] sm:$0xff]
  %v23 = vld [vmem:[%s0 + $0x48] sm:$0xff]
  %v24 = vld [vmem:[%s0 + $0x50] sm:$0xff]
  %v25 = vld [vmem:[%s0 + $0x58] sm:$0xff]
  %v26 = vld [vmem:[%s0 + $0x60] sm:$0xff]
  %v27 = vld [vmem:[%s0 + $0x68] sm:$0xff]
  %v28 = vld [vmem:[%s0 + $0x70] sm:$0xff]
  %v29 = vld [vmem:[%s0 + $0x78] sm:$0xff]
  %v30 = vld [vmem:[%s1] sm:$0xff]
  %v31 = vld [vmem:[%s1 + $0x8] sm:$0xff]
  %v32 = vld [vmem:[%s1 + $0x10] sm:$0xff]
  %v33 = vld [vmem:[%s1 + $0x18] sm:$0xff]
  %v34 = vld [vmem:[%s1 + $0x20] sm:$0xff]
  %v35 = vld [vmem:[%s1 + $0x28] sm:$0xff]
  %v36 = vld [vmem:[%s1 + $0x30] sm:$0xff]
  %v37 = vld [vmem:[%s1 + $0x38] sm:$0xff]
  %vm38 = vcmask 523264
  %v40 = vsel %vm38, %v14, 0
  %v43 = vsel %vm38, %v15, 0
  %v46 = vsel %vm38, %v16, 0
  %v49 = vsel %vm38, %v17, 0
  %v52 = vsel %vm38, %v18, 0
  %v55 = vsel %vm38, %v19, 0
  %v58 = vsel %vm38, %v20, 0
  %v61 = vsel %vm38, %v21, 0
  %v64 = vsel %vm38, %v22, 0
  %v67 = vsel %vm38, %v23, 0
  %v70 = vsel %vm38, %v24, 0
  %v73 = vsel %vm38, %v25, 0
  %v76 = vsel %vm38, %v26, 0
  %v79 = vsel %vm38, %v27, 0
  %v82 = vsel %vm38, %v28, 0
  %v85 = vsel %vm38, %v29, 0
  %87 = vmatprep.subr.mxu0 0.0
  %v88 = vand.u32 %v30, 4294901760
  %89 = vmatpush1.msra.mxu0 %v88
  %90 = vmatprep.subr.mxu0 0.0
  %v91 = vand.u32 %v31, 4294901760
  %92 = vmatpush1.msra.mxu0 %v91
  %93 = vmatprep.subr.mxu0 0.0
  %v94 = vand.u32 %v32, 4294901760
  %95 = vmatpush1.msra.mxu0 %v94
  %96 = vmatprep.subr.mxu0 0.0
  %v97 = vand.u32 %v33, 4294901760
  %98 = vmatpush1.msra.mxu0 %v97
  %99 = vmatprep.subr.mxu0 0.0
  %v100 = vand.u32 %v34, 4294901760
  %101 = vmatpush1.msra.mxu0 %v100
  %102 = vmatprep.subr.mxu0 0.0
  %v103 = vand.u32 %v35, 4294901760
  %104 = vmatpush1.msra.mxu0 %v103
  %105 = vmatprep.subr.mxu0 0.0
  %v106 = vand.u32 %v36, 4294901760
  %107 = vmatpush1.msra.mxu0 %v106
  %108 = vmatprep.subr.mxu0 0.0
  %v109 = vand.u32 %v37, 4294901760
  %110 = vmatpush1.msra.mxu0 %v109
  %111 = vmatprep.subr.mxu0 0.0
  %112 = vmatpush1.msra.mxu0 0.0
  %113 = vmatprep.subr.mxu0 0.0
  %114 = vmatpush1.msra.mxu0 0.0
  %115 = vmatprep.subr.mxu0 0.0
  %116 = vmatpush1.msra.mxu0 0.0
  %117 = vmatprep.subr.mxu0 0.0
  %118 = vmatpush1.msra.mxu0 0.0
  %119 = vmatprep.subr.mxu0 0.0
  %120 = vmatpush1.msra.mxu0 0.0
  %121 = vmatprep.subr.mxu0 0.0
  %122 = vmatpush1.msra.mxu0 0.0
  %123 = vmatprep.subr.mxu0 0.0
  %124 = vmatpush1.msra.mxu0 0.0
  %125 = vmatprep.subr.mxu0 0.0
  %126 = vmatpush1.msra.mxu0 0.0
  %127 = vmatprep.subr.mxu0 0.0
  %128 = vmatpush1.msra.mxu0 0.0
  %129 = vmatprep.subr.mxu0 0.0
  %130 = vmatpush1.msra.mxu0 0.0
  %131 = vmatprep.subr.mxu0 0.0
  %132 = vmatpush1.msra.mxu0 0.0
  %133 = vmatprep.subr.mxu0 0.0
  %134 = vmatpush1.msra.mxu0 0.0
  %135 = vmatprep.subr.mxu0 0.0
  %136 = vmatpush1.msra.mxu0 0.0
  %137 = vmatprep.subr.mxu0 0.0
  %138 = vmatpush1.msra.mxu0 0.0
  %139 = vmatprep.subr.mxu0 0.0
  %140 = vmatpush1.msra.mxu0 0.0
  %141 = vmatprep.subr.mxu0 0.0
  %142 = vmatpush1.msra.mxu0 0.0
  %143 = vmatprep.subr.mxu0 0.0
  %144 = vmatpush1.msra.mxu0 0.0
  %145 = vmatprep.subr.mxu0 0.0
  %146 = vmatpush1.msra.mxu0 0.0
  %147 = vmatprep.subr.mxu0 0.0
  %148 = vmatpush1.msra.mxu0 0.0
  %149 = vmatprep.subr.mxu0 0.0
  %150 = vmatpush1.msra.mxu0 0.0
  %151 = vmatprep.subr.mxu0 0.0
  %152 = vmatpush1.msra.mxu0 0.0
  %153 = vmatprep.subr.mxu0 0.0
  %154 = vmatpush1.msra.mxu0 0.0
  %155 = vmatprep.subr.mxu0 0.0
  %156 = vmatpush1.msra.mxu0 0.0
  %157 = vmatprep.subr.mxu0 0.0
  %158 = vmatpush1.msra.mxu0 0.0
  %159 = vmatprep.mubr.f32.mxu0 0.0
  %v160 = vand.u32 %v40, 4294901760
  %v161 = vsub.f32 %v40, %v160
  %v162 = vand.u32 %v161, 4294901760
  %v163 = vsub.f32 %v161, %v162
  %v164 = vand.u32 %v163, 4294901760
  %165 = vmatmul.mubr.f32.gmra.mrb[0].mxu0 %v164
  %v166 = vpop.f32.mrb[0].mxu0
  %v167 = vadd.f32 0.0, %v166
  %v168 = vpop.f32.mrb[0].mxu0
  %169 = vmatprep.mubr.f32.mxu0 0.0
  %v170 = vand.u32 %v43, 4294901760
  %v171 = vsub.f32 %v43, %v170
  %v172 = vand.u32 %v171, 4294901760
  %v173 = vsub.f32 %v171, %v172
  %v174 = vand.u32 %v173, 4294901760
  %175 = vmatmul.mubr.f32.gmra.mrb[0].mxu0 %v174
  %v176 = vpop.f32.mrb[0].mxu0
  %v177 = vadd.f32 0.0, %v176
  %v178 = vpop.f32.mrb[0].mxu0
  %179 = vmatprep.mubr.f32.mxu0 0.0
  %v180 = vand.u32 %v46, 4294901760
  %v181 = vsub.f32 %v46, %v180
  %v182 = vand.u32 %v181, 4294901760
  %v183 = vsub.f32 %v181, %v182
  %v184 = vand.u32 %v183, 4294901760
  %185 = vmatmul.mubr.f32.gmra.mrb[0].mxu0 %v184
  %v186 = vpop.f32.mrb[0].mxu0
  %v187 = vadd.f32 0.0, %v186
  %v188 = vpop.f32.mrb[0].mxu0
  %189 = vmatprep.mubr.f32.mxu0 0.0
  %v190 = vand.u32 %v49, 4294901760
  %v191 = vsub.f32 %v49, %v190
  %v192 = vand.u32 %v191, 4294901760
  %v193 = vsub.f32 %v191, %v192
  %v194 = vand.u32 %v193, 4294901760
  %195 = vmatmul.mubr.f32.gmra.mrb[0].mxu0 %v194
  %v196 = vpop.f32.mrb[0].mxu0
  %v197 = vadd.f32 0.0, %v196
  %v198 = vpop.f32.mrb[0].mxu0
  %199 = vmatprep.mubr.f32.mxu0 0.0
  %v200 = vand.u32 %v52, 4294901760
  %v201 = vsub.f32 %v52, %v200
  %v202 = vand.u32 %v201, 4294901760
  %v203 = vsub.f32 %v201, %v202
  %v204 = vand.u32 %v203, 4294901760
  %205 = vmatmul.mubr.f32.gmra.mrb[0].mxu0 %v204
  %v206 = vpop.f32.mrb[0].mxu0
  %v207 = vadd.f32 0.0, %v206
  %v208 = vpop.f32.mrb[0].mxu0
  %209 = vmatprep.mubr.f32.mxu0 0.0
  %v210 = vand.u32 %v55, 4294901760
  %v211 = vsub.f32 %v55, %v210
  %v212 = vand.u32 %v211, 4294901760
  %v213 = vsub.f32 %v211, %v212
  %v214 = vand.u32 %v213, 4294901760
  %215 = vmatmul.mubr.f32.gmra.mrb[0].mxu0 %v214
  %v216 = vpop.f32.mrb[0].mxu0
  %v217 = vadd.f32 0.0, %v216
  %v218 = vpop.f32.mrb[0].mxu0
  %219 = vmatprep.mubr.f32.mxu0 0.0
  %v220 = vand.u32 %v58, 4294901760
  %v221 = vsub.f32 %v58, %v220
  %v222 = vand.u32 %v221, 4294901760
  %v223 = vsub.f32 %v221, %v222
  %v224 = vand.u32 %v223, 4294901760
  %225 = vmatmul.mubr.f32.gmra.mrb[0].mxu0 %v224
  %v226 = vpop.f32.mrb[0].mxu0
  %v227 = vadd.f32 0.0, %v226
  %v228 = vpop.f32.mrb[0].mxu0
  %229 = vmatprep.mubr.f32.mxu0 0.0
  %v230 = vand.u32 %v61, 4294901760
  %v231 = vsub.f32 %v61, %v230
  %v232 = vand.u32 %v231, 4294901760
  %v233 = vsub.f32 %v231, %v232
  %v234 = vand.u32 %v233, 4294901760
  %235 = vmatmul.mubr.f32.gmra.mrb[0].mxu0 %v234
  %v236 = vpop.f32.mrb[0].mxu0
  %v237 = vadd.f32 0.0, %v236
  %v238 = vpop.f32.mrb[0].mxu0
  %239 = vmatprep.mubr.f32.mxu0 0.0
  %v240 = vand.u32 %v64, 4294901760
  %v241 = vsub.f32 %v64, %v240
  %v242 = vand.u32 %v241, 4294901760
  %v243 = vsub.f32 %v241, %v242
  %v244 = vand.u32 %v243, 4294901760
  %245 = vmatmul.mubr.f32.gmra.mrb[0].mxu0 %v244
  %v246 = vpop.f32.mrb[0].mxu0
  %v247 = vadd.f32 0.0, %v246
  %v248 = vpop.f32.mrb[0].mxu0
  %249 = vmatprep.mubr.f32.mxu0 0.0
  %v250 = vand.u32 %v67, 4294901760
  %v251 = vsub.f32 %v67, %v250
  %v252 = vand.u32 %v251, 4294901760
  %v253 = vsub.f32 %v251, %v252
  %v254 = vand.u32 %v253, 4294901760
  %255 = vmatmul.mubr.f32.gmra.mrb[0].mxu0 %v254
  %v256 = vpop.f32.mrb[0].mxu0
  %v257 = vadd.f32 0.0, %v256
  %v258 = vpop.f32.mrb[0].mxu0
  %259 = vmatprep.mubr.f32.mxu0 0.0
  %v260 = vand.u32 %v70, 4294901760
  %v261 = vsub.f32 %v70, %v260
  %v262 = vand.u32 %v261, 4294901760
  %v263 = vsub.f32 %v261, %v262
  %v264 = vand.u32 %v263, 4294901760
  %265 = vmatmul.mubr.f32.gmra.mrb[0].mxu0 %v264
  %v266 = vpop.f32.mrb[0].mxu0
  %v267 = vadd.f32 0.0, %v266
  %v268 = vpop.f32.mrb[0].mxu0
  %269 = vmatprep.mubr.f32.mxu0 0.0
  %v270 = vand.u32 %v73, 4294901760
  %v271 = vsub.f32 %v73, %v270
  %v272 = vand.u32 %v271, 4294901760
  %v273 = vsub.f32 %v271, %v272
  %v274 = vand.u32 %v273, 4294901760
  %275 = vmatmul.mubr.f32.gmra.mrb[0].mxu0 %v274
  %v276 = vpop.f32.mrb[0].mxu0
  %v277 = vadd.f32 0.0, %v276
  %v278 = vpop.f32.mrb[0].mxu0
  %279 = vmatprep.mubr.f32.mxu0 0.0
  %v280 = vand.u32 %v76, 4294901760
  %v281 = vsub.f32 %v76, %v280
  %v282 = vand.u32 %v281, 4294901760
  %v283 = vsub.f32 %v281, %v282
  %v284 = vand.u32 %v283, 4294901760
  %285 = vmatmul.mubr.f32.gmra.mrb[0].mxu0 %v284
  %v286 = vpop.f32.mrb[0].mxu0
  %v287 = vadd.f32 0.0, %v286
  %v288 = vpop.f32.mrb[0].mxu0
  %289 = vmatprep.mubr.f32.mxu0 0.0
  %v290 = vand.u32 %v79, 4294901760
  %v291 = vsub.f32 %v79, %v290
  %v292 = vand.u32 %v291, 4294901760
  %v293 = vsub.f32 %v291, %v292
  %v294 = vand.u32 %v293, 4294901760
  %295 = vmatmul.mubr.f32.gmra.mrb[0].mxu0 %v294
  %v296 = vpop.f32.mrb[0].mxu0
  %v297 = vadd.f32 0.0, %v296
  %v298 = vpop.f32.mrb[0].mxu0
  %299 = vmatprep.mubr.f32.mxu0 0.0
  %v300 = vand.u32 %v82, 4294901760
  %v301 = vsub.f32 %v82, %v300
  %v302 = vand.u32 %v301, 4294901760
  %v303 = vsub.f32 %v301, %v302
  %v304 = vand.u32 %v303, 4294901760
  %305 = vmatmul.mubr.f32.gmra.mrb[0].mxu0 %v304
  %v306 = vpop.f32.mrb[0].mxu0
  %v307 = vadd.f32 0.0, %v306
  %v308 = vpop.f32.mrb[0].mxu0
  %309 = vmatprep.mubr.f32.mxu0 0.0
  %v310 = vand.u32 %v85, 4294901760
  %v311 = vsub.f32 %v85, %v310
  %v312 = vand.u32 %v311, 4294901760
  %v313 = vsub.f32 %v311, %v312
  %v314 = vand.u32 %v313, 4294901760
  %315 = vmatmul.mubr.f32.gmra.mrb[0].mxu0 %v314
  %v316 = vpop.f32.mrb[0].mxu0
  %v317 = vadd.f32 0.0, %v316
  %v318 = vpop.f32.mrb[0].mxu0
  %319 = vdwg.mxu0
  %320 = vmatprep.subr.mxu0 0.0
  %v321 = vand.u32 %v30, 4294901760
  %v322 = vsub.f32 %v30, %v321
  %v323 = vand.u32 %v322, 4294901760
  %v324 = vsub.f32 %v322, %v323
  %v325 = vand.u32 %v324, 4294901760
  %326 = vmatpush1.msra.mxu0 %v325
  %327 = vmatprep.subr.mxu0 0.0
  %v328 = vand.u32 %v31, 4294901760
  %v329 = vsub.f32 %v31, %v328
  %v330 = vand.u32 %v329, 4294901760
  %v331 = vsub.f32 %v329, %v330
  %v332 = vand.u32 %v331, 4294901760
  %333 = vmatpush1.msra.mxu0 %v332
  %334 = vmatprep.subr.mxu0 0.0
  %v335 = vand.u32 %v32, 4294901760
  %v336 = vsub.f32 %v32, %v335
  %v337 = vand.u32 %v336, 4294901760
  %v338 = vsub.f32 %v336, %v337
  %v339 = vand.u32 %v338, 4294901760
  %340 = vmatpush1.msra.mxu0 %v339
  %341 = vmatprep.subr.mxu0 0.0
  %v342 = vand.u32 %v33, 4294901760
  %v343 = vsub.f32 %v33, %v342
  %v344 = vand.u32 %v343, 4294901760
  %v345 = vsub.f32 %v343, %v344
  %v346 = vand.u32 %v345, 4294901760
  %347 = vmatpush1.msra.mxu0 %v346
  %348 = vmatprep.subr.mxu0 0.0
  %v349 = vand.u32 %v34, 4294901760
  %v350 = vsub.f32 %v34, %v349
  %v351 = vand.u32 %v350, 4294901760
  %v352 = vsub.f32 %v350, %v351
  %v353 = vand.u32 %v352, 4294901760
  %354 = vmatpush1.msra.mxu0 %v353
  %355 = vmatprep.subr.mxu0 0.0
  %v356 = vand.u32 %v35, 4294901760
  %v357 = vsub.f32 %v35, %v356
  %v358 = vand.u32 %v357, 4294901760
  %v359 = vsub.f32 %v357, %v358
  %v360 = vand.u32 %v359, 4294901760
  %361 = vmatpush1.msra.mxu0 %v360
  %362 = vmatprep.subr.mxu0 0.0
  %v363 = vand.u32 %v36, 4294901760
  %v364 = vsub.f32 %v36, %v363
  %v365 = vand.u32 %v364, 4294901760
  %v366 = vsub.f32 %v364, %v365
  %v367 = vand.u32 %v366, 4294901760
  %368 = vmatpush1.msra.mxu0 %v367
  %369 = vmatprep.subr.mxu0 0.0
  %v370 = vand.u32 %v37, 4294901760
  %v371 = vsub.f32 %v37, %v370
  %v372 = vand.u32 %v371, 4294901760
  %v373 = vsub.f32 %v371, %v372
  %v374 = vand.u32 %v373, 4294901760
  %375 = vmatpush1.msra.mxu0 %v374
  %376 = vmatprep.subr.mxu0 0.0
  %377 = vmatpush1.msra.mxu0 0.0
  %378 = vmatprep.subr.mxu0 0.0
  %379 = vmatpush1.msra.mxu0 0.0
  %380 = vmatprep.subr.mxu0 0.0
  %381 = vmatpush1.msra.mxu0 0.0
  %382 = vmatprep.subr.mxu0 0.0
  %383 = vmatpush1.msra.mxu0 0.0
  %384 = vmatprep.subr.mxu0 0.0
  %385 = vmatpush1.msra.mxu0 0.0
  %386 = vmatprep.subr.mxu0 0.0
  %387 = vmatpush1.msra.mxu0 0.0
  %388 = vmatprep.subr.mxu0 0.0
  %389 = vmatpush1.msra.mxu0 0.0
  %390 = vmatprep.subr.mxu0 0.0
  %391 = vmatpush1.msra.mxu0 0.0
  %392 = vmatprep.subr.mxu0 0.0
  %393 = vmatpush1.msra.mxu0 0.0
  %394 = vmatprep.subr.mxu0 0.0
  %395 = vmatpush1.msra.mxu0 0.0
  %396 = vmatprep.subr.mxu0 0.0
  %397 = vmatpush1.msra.mxu0 0.0
  %398 = vmatprep.subr.mxu0 0.0
  %399 = vmatpush1.msra.mxu0 0.0
  %400 = vmatprep.subr.mxu0 0.0
  %401 = vmatpush1.msra.mxu0 0.0
  %402 = vmatprep.subr.mxu0 0.0
  %403 = vmatpush1.msra.mxu0 0.0
  %404 = vmatprep.subr.mxu0 0.0
  %405 = vmatpush1.msra.mxu0 0.0
  %406 = vmatprep.subr.mxu0 0.0
  %407 = vmatpush1.msra.mxu0 0.0
  %408 = vmatprep.subr.mxu0 0.0
  %409 = vmatpush1.msra.mxu0 0.0
  %410 = vmatprep.subr.mxu0 0.0
  %411 = vmatpush1.msra.mxu0 0.0
  %412 = vmatprep.subr.mxu0 0.0
  %413 = vmatpush1.msra.mxu0 0.0
  %414 = vmatprep.subr.mxu0 0.0
  %415 = vmatpush1.msra.mxu0 0.0
  %416 = vmatprep.subr.mxu0 0.0
  %417 = vmatpush1.msra.mxu0 0.0
  %418 = vmatprep.subr.mxu0 0.0
  %419 = vmatpush1.msra.mxu0 0.0
  %420 = vmatprep.subr.mxu0 0.0
  %421 = vmatpush1.msra.mxu0 0.0
  %422 = vmatprep.subr.mxu0 0.0
  %423 = vmatpush1.msra.mxu0 0.0
  %424 = vmatprep.mubr.f32.mxu0 0.0
  %v425 = vand.u32 %v40, 4294901760
  %426 = vmatmul.mubr.f32.gmra.mrb[0].mxu0 %v425
  %v427 = vpop.f32.mrb[0].mxu0
  %v428 = vadd.f32 %v167, %v427
  %v429 = vpop.f32.mrb[0].mxu0
  %430 = vmatprep.mubr.f32.mxu0 0.0
  %v431 = vand.u32 %v43, 4294901760
  %432 = vmatmul.mubr.f32.gmra.mrb[0].mxu0 %v431
  %v433 = vpop.f32.mrb[0].mxu0
  %v434 = vadd.f32 %v177, %v433
  %v435 = vpop.f32.mrb[0].mxu0
  %436 = vmatprep.mubr.f32.mxu0 0.0
  %v437 = vand.u32 %v46, 4294901760
  %438 = vmatmul.mubr.f32.gmra.mrb[0].mxu0 %v437
  %v439 = vpop.f32.mrb[0].mxu0
  %v440 = vadd.f32 %v187, %v439
  %v441 = vpop.f32.mrb[0].mxu0
  %442 = vmatprep.mubr.f32.mxu0 0.0
  %v443 = vand.u32 %v49, 4294901760
  %444 = vmatmul.mubr.f32.gmra.mrb[0].mxu0 %v443
  %v445 = vpop.f32.mrb[0].mxu0
  %v446 = vadd.f32 %v197, %v445
  %v447 = vpop.f32.mrb[0].mxu0
  %448 = vmatprep.mubr.f32.mxu0 0.0
  %v449 = vand.u32 %v52, 4294901760
  %450 = vmatmul.mubr.f32.gmra.mrb[0].mxu0 %v449
  %v451 = vpop.f32.mrb[0].mxu0
  %v452 = vadd.f32 %v207, %v451
  %v453 = vpop.f32.mrb[0].mxu0
  %454 = vmatprep.mubr.f32.mxu0 0.0
  %v455 = vand.u32 %v55, 4294901760
  %456 = vmatmul.mubr.f32.gmra.mrb[0].mxu0 %v455
  %v457 = vpop.f32.mrb[0].mxu0
  %v458 = vadd.f32 %v217, %v457
  %v459 = vpop.f32.mrb[0].mxu0
  %460 = vmatprep.mubr.f32.mxu0 0.0
  %v461 = vand.u32 %v58, 4294901760
  %462 = vmatmul.mubr.f32.gmra.mrb[0].mxu0 %v461
  %v463 = vpop.f32.mrb[0].mxu0
  %v464 = vadd.f32 %v227, %v463
  %v465 = vpop.f32.mrb[0].mxu0
  %466 = vmatprep.mubr.f32.mxu0 0.0
  %v467 = vand.u32 %v61, 4294901760
  %468 = vmatmul.mubr.f32.gmra.mrb[0].mxu0 %v467
  %v469 = vpop.f32.mrb[0].mxu0
  %v470 = vadd.f32 %v237, %v469
  %v471 = vpop.f32.mrb[0].mxu0
  %472 = vmatprep.mubr.f32.mxu0 0.0
  %v473 = vand.u32 %v64, 4294901760
  %474 = vmatmul.mubr.f32.gmra.mrb[0].mxu0 %v473
  %v475 = vpop.f32.mrb[0].mxu0
  %v476 = vadd.f32 %v247, %v475
  %v477 = vpop.f32.mrb[0].mxu0
  %478 = vmatprep.mubr.f32.mxu0 0.0
  %v479 = vand.u32 %v67, 4294901760
  %480 = vmatmul.mubr.f32.gmra.mrb[0].mxu0 %v479
  %v481 = vpop.f32.mrb[0].mxu0
  %v482 = vadd.f32 %v257, %v481
  %v483 = vpop.f32.mrb[0].mxu0
  %484 = vmatprep.mubr.f32.mxu0 0.0
  %v485 = vand.u32 %v70, 4294901760
  %486 = vmatmul.mubr.f32.gmra.mrb[0].mxu0 %v485
  %v487 = vpop.f32.mrb[0].mxu0
  %v488 = vadd.f32 %v267, %v487
  %v489 = vpop.f32.mrb[0].mxu0
  %490 = vmatprep.mubr.f32.mxu0 0.0
  %v491 = vand.u32 %v73, 4294901760
  %492 = vmatmul.mubr.f32.gmra.mrb[0].mxu0 %v491
  %v493 = vpop.f32.mrb[0].mxu0
  %v494 = vadd.f32 %v277, %v493
  %v495 = vpop.f32.mrb[0].mxu0
  %496 = vmatprep.mubr.f32.mxu0 0.0
  %v497 = vand.u32 %v76, 4294901760
  %498 = vmatmul.mubr.f32.gmra.mrb[0].mxu0 %v497
  %v499 = vpop.f32.mrb[0].mxu0
  %v500 = vadd.f32 %v287, %v499
  %v501 = vpop.f32.mrb[0].mxu0
  %502 = vmatprep.mubr.f32.mxu0 0.0
  %v503 = vand.u32 %v79, 4294901760
  %504 = vmatmul.mubr.f32.gmra.mrb[0].mxu0 %v503
  %v505 = vpop.f32.mrb[0].mxu0
  %v506 = vadd.f32 %v297, %v505
  %v507 = vpop.f32.mrb[0].mxu0
  %508 = vmatprep.mubr.f32.mxu0 0.0
  %v509 = vand.u32 %v82, 4294901760
  %510 = vmatmul.mubr.f32.gmra.mrb[0].mxu0 %v509
  %v511 = vpop.f32.mrb[0].mxu0
  %v512 = vadd.f32 %v307, %v511
  %v513 = vpop.f32.mrb[0].mxu0
  %514 = vmatprep.mubr.f32.mxu0 0.0
  %v515 = vand.u32 %v85, 4294901760
  %516 = vmatmul.mubr.f32.gmra.mrb[0].mxu0 %v515
  %v517 = vpop.f32.mrb[0].mxu0
  %v518 = vadd.f32 %v317, %v517
  %v519 = vpop.f32.mrb[0].mxu0
  %520 = vdwg.mxu0
  %521 = vmatprep.subr.mxu0 0.0
  %v522 = vand.u32 %v30, 4294901760
  %v523 = vsub.f32 %v30, %v522
  %524 = vmatpush1.msra.mxu0 %v523
  %525 = vmatprep.subr.mxu0 0.0
  %v526 = vand.u32 %v31, 4294901760
  %v527 = vsub.f32 %v31, %v526
  %528 = vmatpush1.msra.mxu0 %v527
  %529 = vmatprep.subr.mxu0 0.0
  %v530 = vand.u32 %v32, 4294901760
  %v531 = vsub.f32 %v32, %v530
  %532 = vmatpush1.msra.mxu0 %v531
  %533 = vmatprep.subr.mxu0 0.0
  %v534 = vand.u32 %v33, 4294901760
  %v535 = vsub.f32 %v33, %v534
  %536 = vmatpush1.msra.mxu0 %v535
  %537 = vmatprep.subr.mxu0 0.0
  %v538 = vand.u32 %v34, 4294901760
  %v539 = vsub.f32 %v34, %v538
  %540 = vmatpush1.msra.mxu0 %v539
  %541 = vmatprep.subr.mxu0 0.0
  %v542 = vand.u32 %v35, 4294901760
  %v543 = vsub.f32 %v35, %v542
  %544 = vmatpush1.msra.mxu0 %v543
  %545 = vmatprep.subr.mxu0 0.0
  %v546 = vand.u32 %v36, 4294901760
  %v547 = vsub.f32 %v36, %v546
  %548 = vmatpush1.msra.mxu0 %v547
  %549 = vmatprep.subr.mxu0 0.0
  %v550 = vand.u32 %v37, 4294901760
  %v551 = vsub.f32 %v37, %v550
  %552 = vmatpush1.msra.mxu0 %v551
  %553 = vmatprep.subr.mxu0 0.0
  %554 = vmatpush1.msra.mxu0 0.0
  %555 = vmatprep.subr.mxu0 0.0
  %556 = vmatpush1.msra.mxu0 0.0
  %557 = vmatprep.subr.mxu0 0.0
  %558 = vmatpush1.msra.mxu0 0.0
  %559 = vmatprep.subr.mxu0 0.0
  %560 = vmatpush1.msra.mxu0 0.0
  %561 = vmatprep.subr.mxu0 0.0
  %562 = vmatpush1.msra.mxu0 0.0
  %563 = vmatprep.subr.mxu0 0.0
  %564 = vmatpush1.msra.mxu0 0.0
  %565 = vmatprep.subr.mxu0 0.0
  %566 = vmatpush1.msra.mxu0 0.0
  %567 = vmatprep.subr.mxu0 0.0
  %568 = vmatpush1.msra.mxu0 0.0
  %569 = vmatprep.subr.mxu0 0.0
  %570 = vmatpush1.msra.mxu0 0.0
  %571 = vmatprep.subr.mxu0 0.0
  %572 = vmatpush1.msra.mxu0 0.0
  %573 = vmatprep.subr.mxu0 0.0
  %574 = vmatpush1.msra.mxu0 0.0
  %575 = vmatprep.subr.mxu0 0.0
  %576 = vmatpush1.msra.mxu0 0.0
  %577 = vmatprep.subr.mxu0 0.0
  %578 = vmatpush1.msra.mxu0 0.0
  %579 = vmatprep.subr.mxu0 0.0
  %580 = vmatpush1.msra.mxu0 0.0
  %581 = vmatprep.subr.mxu0 0.0
  %582 = vmatpush1.msra.mxu0 0.0
  %583 = vmatprep.subr.mxu0 0.0
  %584 = vmatpush1.msra.mxu0 0.0
  %585 = vmatprep.subr.mxu0 0.0
  %586 = vmatpush1.msra.mxu0 0.0
  %587 = vmatprep.subr.mxu0 0.0
  %588 = vmatpush1.msra.mxu0 0.0
  %589 = vmatprep.subr.mxu0 0.0
  %590 = vmatpush1.msra.mxu0 0.0
  %591 = vmatprep.subr.mxu0 0.0
  %592 = vmatpush1.msra.mxu0 0.0
  %593 = vmatprep.subr.mxu0 0.0
  %594 = vmatpush1.msra.mxu0 0.0
  %595 = vmatprep.subr.mxu0 0.0
  %596 = vmatpush1.msra.mxu0 0.0
  %597 = vmatprep.subr.mxu0 0.0
  %598 = vmatpush1.msra.mxu0 0.0
  %599 = vmatprep.subr.mxu0 0.0
  %600 = vmatpush1.msra.mxu0 0.0
  %601 = vmatprep.mubr.f32.mxu0 0.0
  %v602 = vand.u32 %v40, 4294901760
  %v603 = vsub.f32 %v40, %v602
  %604 = vmatmul.mubr.f32.gmra.mrb[0].mxu0 %v603
  %v605 = vpop.f32.mrb[0].mxu0
  %v606 = vadd.f32 %v428, %v605
  %v607 = vpop.f32.mrb[0].mxu0
  %608 = vmatprep.mubr.f32.mxu0 0.0
  %v609 = vand.u32 %v43, 4294901760
  %v610 = vsub.f32 %v43, %v609
  %611 = vmatmul.mubr.f32.gmra.mrb[0].mxu0 %v610
  %v612 = vpop.f32.mrb[0].mxu0
  %v613 = vadd.f32 %v434, %v612
  %v614 = vpop.f32.mrb[0].mxu0
  %615 = vmatprep.mubr.f32.mxu0 0.0
  %v616 = vand.u32 %v46, 4294901760
  %v617 = vsub.f32 %v46, %v616
  %618 = vmatmul.mubr.f32.gmra.mrb[0].mxu0 %v617
  %v619 = vpop.f32.mrb[0].mxu0
  %v620 = vadd.f32 %v440, %v619
  %v621 = vpop.f32.mrb[0].mxu0
  %622 = vmatprep.mubr.f32.mxu0 0.0
  %v623 = vand.u32 %v49, 4294901760
  %v624 = vsub.f32 %v49, %v623
  %625 = vmatmul.mubr.f32.gmra.mrb[0].mxu0 %v624
  %v626 = vpop.f32.mrb[0].mxu0
  %v627 = vadd.f32 %v446, %v626
  %v628 = vpop.f32.mrb[0].mxu0
  %629 = vmatprep.mubr.f32.mxu0 0.0
  %v630 = vand.u32 %v52, 4294901760
  %v631 = vsub.f32 %v52, %v630
  %632 = vmatmul.mubr.f32.gmra.mrb[0].mxu0 %v631
  %v633 = vpop.f32.mrb[0].mxu0
  %v634 = vadd.f32 %v452, %v633
  %v635 = vpop.f32.mrb[0].mxu0
  %636 = vmatprep.mubr.f32.mxu0 0.0
  %v637 = vand.u32 %v55, 4294901760
  %v638 = vsub.f32 %v55, %v637
  %639 = vmatmul.mubr.f32.gmra.mrb[0].mxu0 %v638
  %v640 = vpop.f32.mrb[0].mxu0
  %v641 = vadd.f32 %v458, %v640
  %v642 = vpop.f32.mrb[0].mxu0
  %643 = vmatprep.mubr.f32.mxu0 0.0
  %v644 = vand.u32 %v58, 4294901760
  %v645 = vsub.f32 %v58, %v644
  %646 = vmatmul.mubr.f32.gmra.mrb[0].mxu0 %v645
  %v647 = vpop.f32.mrb[0].mxu0
  %v648 = vadd.f32 %v464, %v647
  %v649 = vpop.f32.mrb[0].mxu0
  %650 = vmatprep.mubr.f32.mxu0 0.0
  %v651 = vand.u32 %v61, 4294901760
  %v652 = vsub.f32 %v61, %v651
  %653 = vmatmul.mubr.f32.gmra.mrb[0].mxu0 %v652
  %v654 = vpop.f32.mrb[0].mxu0
  %v655 = vadd.f32 %v470, %v654
  %v656 = vpop.f32.mrb[0].mxu0
  %657 = vmatprep.mubr.f32.mxu0 0.0
  %v658 = vand.u32 %v64, 4294901760
  %v659 = vsub.f32 %v64, %v658
  %660 = vmatmul.mubr.f32.gmra.mrb[0].mxu0 %v659
  %v661 = vpop.f32.mrb[0].mxu0
  %v662 = vadd.f32 %v476, %v661
  %v663 = vpop.f32.mrb[0].mxu0
  %664 = vmatprep.mubr.f32.mxu0 0.0
  %v665 = vand.u32 %v67, 4294901760
  %v666 = vsub.f32 %v67, %v665
  %667 = vmatmul.mubr.f32.gmra.mrb[0].mxu0 %v666
  %v668 = vpop.f32.mrb[0].mxu0
  %v669 = vadd.f32 %v482, %v668
  %v670 = vpop.f32.mrb[0].mxu0
  %671 = vmatprep.mubr.f32.mxu0 0.0
  %v672 = vand.u32 %v70, 4294901760
  %v673 = vsub.f32 %v70, %v672
  %674 = vmatmul.mubr.f32.gmra.mrb[0].mxu0 %v673
  %v675 = vpop.f32.mrb[0].mxu0
  %v676 = vadd.f32 %v488, %v675
  %v677 = vpop.f32.mrb[0].mxu0
  %678 = vmatprep.mubr.f32.mxu0 0.0
  %v679 = vand.u32 %v73, 4294901760
  %v680 = vsub.f32 %v73, %v679
  %681 = vmatmul.mubr.f32.gmra.mrb[0].mxu0 %v680
  %v682 = vpop.f32.mrb[0].mxu0
  %v683 = vadd.f32 %v494, %v682
  %v684 = vpop.f32.mrb[0].mxu0
  %685 = vmatprep.mubr.f32.mxu0 0.0
  %v686 = vand.u32 %v76, 4294901760
  %v687 = vsub.f32 %v76, %v686
  %688 = vmatmul.mubr.f32.gmra.mrb[0].mxu0 %v687
  %v689 = vpop.f32.mrb[0].mxu0
  %v690 = vadd.f32 %v500, %v689
  %v691 = vpop.f32.mrb[0].mxu0
  %692 = vmatprep.mubr.f32.mxu0 0.0
  %v693 = vand.u32 %v79, 4294901760
  %v694 = vsub.f32 %v79, %v693
  %695 = vmatmul.mubr.f32.gmra.mrb[0].mxu0 %v694
  %v696 = vpop.f32.mrb[0].mxu0
  %v697 = vadd.f32 %v506, %v696
  %v698 = vpop.f32.mrb[0].mxu0
  %699 = vmatprep.mubr.f32.mxu0 0.0
  %v700 = vand.u32 %v82, 4294901760
  %v701 = vsub.f32 %v82, %v700
  %702 = vmatmul.mubr.f32.gmra.mrb[0].mxu0 %v701
  %v703 = vpop.f32.mrb[0].mxu0
  %v704 = vadd.f32 %v512, %v703
  %v705 = vpop.f32.mrb[0].mxu0
  %706 = vmatprep.mubr.f32.mxu0 0.0
  %v707 = vand.u32 %v85, 4294901760
  %v708 = vsub.f32 %v85, %v707
  %709 = vmatmul.mubr.f32.gmra.mrb[0].mxu0 %v708
  %v710 = vpop.f32.mrb[0].mxu0
  %v711 = vadd.f32 %v518, %v710
  %v712 = vpop.f32.mrb[0].mxu0
  %713 = vdwg.mxu0
  %714 = vmatprep.subr.mxu0 0.0
  %v715 = vand.u32 %v30, 4294901760
  %716 = vmatpush1.msra.mxu0 %v715
  %717 = vmatprep.subr.mxu0 0.0
  %v718 = vand.u32 %v31, 4294901760
  %719 = vmatpush1.msra.mxu0 %v718
  %720 = vmatprep.subr.mxu0 0.0
  %v721 = vand.u32 %v32, 4294901760
  %722 = vmatpush1.msra.mxu0 %v721
  %723 = vmatprep.subr.mxu0 0.0
  %v724 = vand.u32 %v33, 4294901760
  %725 = vmatpush1.msra.mxu0 %v724
  %726 = vmatprep.subr.mxu0 0.0
  %v727 = vand.u32 %v34, 4294901760
  %728 = vmatpush1.msra.mxu0 %v727
  %729 = vmatprep.subr.mxu0 0.0
  %v730 = vand.u32 %v35, 4294901760
  %731 = vmatpush1.msra.mxu0 %v730
  %732 = vmatprep.subr.mxu0 0.0
  %v733 = vand.u32 %v36, 4294901760
  %734 = vmatpush1.msra.mxu0 %v733
  %735 = vmatprep.subr.mxu0 0.0
  %v736 = vand.u32 %v37, 4294901760
  %737 = vmatpush1.msra.mxu0 %v736
  %738 = vmatprep.subr.mxu0 0.0
  %739 = vmatpush1.msra.mxu0 0.0
  %740 = vmatprep.subr.mxu0 0.0
  %741 = vmatpush1.msra.mxu0 0.0
  %742 = vmatprep.subr.mxu0 0.0
  %743 = vmatpush1.msra.mxu0 0.0
  %744 = vmatprep.subr.mxu0 0.0
  %745 = vmatpush1.msra.mxu0 0.0
  %746 = vmatprep.subr.mxu0 0.0
  %747 = vmatpush1.msra.mxu0 0.0
  %748 = vmatprep.subr.mxu0 0.0
  %749 = vmatpush1.msra.mxu0 0.0
  %750 = vmatprep.subr.mxu0 0.0
  %751 = vmatpush1.msra.mxu0 0.0
  %752 = vmatprep.subr.mxu0 0.0
  %753 = vmatpush1.msra.mxu0 0.0
  %754 = vmatprep.subr.mxu0 0.0
  %755 = vmatpush1.msra.mxu0 0.0
  %756 = vmatprep.subr.mxu0 0.0
  %757 = vmatpush1.msra.mxu0 0.0
  %758 = vmatprep.subr.mxu0 0.0
  %759 = vmatpush1.msra.mxu0 0.0
  %760 = vmatprep.subr.mxu0 0.0
  %761 = vmatpush1.msra.mxu0 0.0
  %762 = vmatprep.subr.mxu0 0.0
  %763 = vmatpush1.msra.mxu0 0.0
  %764 = vmatprep.subr.mxu0 0.0
  %765 = vmatpush1.msra.mxu0 0.0
  %766 = vmatprep.subr.mxu0 0.0
  %767 = vmatpush1.msra.mxu0 0.0
  %768 = vmatprep.subr.mxu0 0.0
  %769 = vmatpush1.msra.mxu0 0.0
  %770 = vmatprep.subr.mxu0 0.0
  %771 = vmatpush1.msra.mxu0 0.0
  %772 = vmatprep.subr.mxu0 0.0
  %773 = vmatpush1.msra.mxu0 0.0
  %774 = vmatprep.subr.mxu0 0.0
  %775 = vmatpush1.msra.mxu0 0.0
  %776 = vmatprep.subr.mxu0 0.0
  %777 = vmatpush1.msra.mxu0 0.0
  %778 = vmatprep.subr.mxu0 0.0
  %779 = vmatpush1.msra.mxu0 0.0
  %780 = vmatprep.subr.mxu0 0.0
  %781 = vmatpush1.msra.mxu0 0.0
  %782 = vmatprep.subr.mxu0 0.0
  %783 = vmatpush1.msra.mxu0 0.0
  %784 = vmatprep.subr.mxu0 0.0
  %785 = vmatpush1.msra.mxu0 0.0
  %786 = vmatprep.mubr.f32.mxu0 0.0
  %v787 = vand.u32 %v40, 4294901760
  %v788 = vsub.f32 %v40, %v787
  %v789 = vand.u32 %v788, 4294901760
  %790 = vmatmul.mubr.f32.gmra.mrb[0].mxu0 %v789
  %v791 = vpop.f32.mrb[0].mxu0
  %v792 = vadd.f32 %v606, %v791
  %v793 = vpop.f32.mrb[0].mxu0
  %794 = vmatprep.mubr.f32.mxu0 0.0
  %v795 = vand.u32 %v43, 4294901760
  %v796 = vsub.f32 %v43, %v795
  %v797 = vand.u32 %v796, 4294901760
  %798 = vmatmul.mubr.f32.gmra.mrb[0].mxu0 %v797
  %v799 = vpop.f32.mrb[0].mxu0
  %v800 = vadd.f32 %v613, %v799
  %v801 = vpop.f32.mrb[0].mxu0
  %802 = vmatprep.mubr.f32.mxu0 0.0
  %v803 = vand.u32 %v46, 4294901760
  %v804 = vsub.f32 %v46, %v803
  %v805 = vand.u32 %v804, 4294901760
  %806 = vmatmul.mubr.f32.gmra.mrb[0].mxu0 %v805
  %v807 = vpop.f32.mrb[0].mxu0
  %v808 = vadd.f32 %v620, %v807
  %v809 = vpop.f32.mrb[0].mxu0
  %810 = vmatprep.mubr.f32.mxu0 0.0
  %v811 = vand.u32 %v49, 4294901760
  %v812 = vsub.f32 %v49, %v811
  %v813 = vand.u32 %v812, 4294901760
  %814 = vmatmul.mubr.f32.gmra.mrb[0].mxu0 %v813
  %v815 = vpop.f32.mrb[0].mxu0
  %v816 = vadd.f32 %v627, %v815
  %v817 = vpop.f32.mrb[0].mxu0
  %818 = vmatprep.mubr.f32.mxu0 0.0
  %v819 = vand.u32 %v52, 4294901760
  %v820 = vsub.f32 %v52, %v819
  %v821 = vand.u32 %v820, 4294901760
  %822 = vmatmul.mubr.f32.gmra.mrb[0].mxu0 %v821
  %v823 = vpop.f32.mrb[0].mxu0
  %v824 = vadd.f32 %v634, %v823
  %v825 = vpop.f32.mrb[0].mxu0
  %826 = vmatprep.mubr.f32.mxu0 0.0
  %v827 = vand.u32 %v55, 4294901760
  %v828 = vsub.f32 %v55, %v827
  %v829 = vand.u32 %v828, 4294901760
  %830 = vmatmul.mubr.f32.gmra.mrb[0].mxu0 %v829
  %v831 = vpop.f32.mrb[0].mxu0
  %v832 = vadd.f32 %v641, %v831
  %v833 = vpop.f32.mrb[0].mxu0
  %834 = vmatprep.mubr.f32.mxu0 0.0
  %v835 = vand.u32 %v58, 4294901760
  %v836 = vsub.f32 %v58, %v835
  %v837 = vand.u32 %v836, 4294901760
  %838 = vmatmul.mubr.f32.gmra.mrb[0].mxu0 %v837
  %v839 = vpop.f32.mrb[0].mxu0
  %v840 = vadd.f32 %v648, %v839
  %v841 = vpop.f32.mrb[0].mxu0
  %842 = vmatprep.mubr.f32.mxu0 0.0
  %v843 = vand.u32 %v61, 4294901760
  %v844 = vsub.f32 %v61, %v843
  %v845 = vand.u32 %v844, 4294901760
  %846 = vmatmul.mubr.f32.gmra.mrb[0].mxu0 %v845
  %v847 = vpop.f32.mrb[0].mxu0
  %v848 = vadd.f32 %v655, %v847
  %v849 = vpop.f32.mrb[0].mxu0
  %850 = vmatprep.mubr.f32.mxu0 0.0
  %v851 = vand.u32 %v64, 4294901760
  %v852 = vsub.f32 %v64, %v851
  %v853 = vand.u32 %v852, 4294901760
  %854 = vmatmul.mubr.f32.gmra.mrb[0].mxu0 %v853
  %v855 = vpop.f32.mrb[0].mxu0
  %v856 = vadd.f32 %v662, %v855
  %v857 = vpop.f32.mrb[0].mxu0
  %858 = vmatprep.mubr.f32.mxu0 0.0
  %v859 = vand.u32 %v67, 4294901760
  %v860 = vsub.f32 %v67, %v859
  %v861 = vand.u32 %v860, 4294901760
  %862 = vmatmul.mubr.f32.gmra.mrb[0].mxu0 %v861
  %v863 = vpop.f32.mrb[0].mxu0
  %v864 = vadd.f32 %v669, %v863
  %v865 = vpop.f32.mrb[0].mxu0
  %866 = vmatprep.mubr.f32.mxu0 0.0
  %v867 = vand.u32 %v70, 4294901760
  %v868 = vsub.f32 %v70, %v867
  %v869 = vand.u32 %v868, 4294901760
  %870 = vmatmul.mubr.f32.gmra.mrb[0].mxu0 %v869
  %v871 = vpop.f32.mrb[0].mxu0
  %v872 = vadd.f32 %v676, %v871
  %v873 = vpop.f32.mrb[0].mxu0
  %874 = vmatprep.mubr.f32.mxu0 0.0
  %v875 = vand.u32 %v73, 4294901760
  %v876 = vsub.f32 %v73, %v875
  %v877 = vand.u32 %v876, 4294901760
  %878 = vmatmul.mubr.f32.gmra.mrb[0].mxu0 %v877
  %v879 = vpop.f32.mrb[0].mxu0
  %v880 = vadd.f32 %v683, %v879
  %v881 = vpop.f32.mrb[0].mxu0
  %882 = vmatprep.mubr.f32.mxu0 0.0
  %v883 = vand.u32 %v76, 4294901760
  %v884 = vsub.f32 %v76, %v883
  %v885 = vand.u32 %v884, 4294901760
  %886 = vmatmul.mubr.f32.gmra.mrb[0].mxu0 %v885
  %v887 = vpop.f32.mrb[0].mxu0
  %v888 = vadd.f32 %v690, %v887
  %v889 = vpop.f32.mrb[0].mxu0
  %890 = vmatprep.mubr.f32.mxu0 0.0
  %v891 = vand.u32 %v79, 4294901760
  %v892 = vsub.f32 %v79, %v891
  %v893 = vand.u32 %v892, 4294901760
  %894 = vmatmul.mubr.f32.gmra.mrb[0].mxu0 %v893
  %v895 = vpop.f32.mrb[0].mxu0
  %v896 = vadd.f32 %v697, %v895
  %v897 = vpop.f32.mrb[0].mxu0
  %898 = vmatprep.mubr.f32.mxu0 0.0
  %v899 = vand.u32 %v82, 4294901760
  %v900 = vsub.f32 %v82, %v899
  %v901 = vand.u32 %v900, 4294901760
  %902 = vmatmul.mubr.f32.gmra.mrb[0].mxu0 %v901
  %v903 = vpop.f32.mrb[0].mxu0
  %v904 = vadd.f32 %v704, %v903
  %v905 = vpop.f32.mrb[0].mxu0
  %906 = vmatprep.mubr.f32.mxu0 0.0
  %v907 = vand.u32 %v85, 4294901760
  %v908 = vsub.f32 %v85, %v907
  %v909 = vand.u32 %v908, 4294901760
  %910 = vmatmul.mubr.f32.gmra.mrb[0].mxu0 %v909
  %v911 = vpop.f32.mrb[0].mxu0
  %v912 = vadd.f32 %v711, %v911
  %v913 = vpop.f32.mrb[0].mxu0
  %914 = vdwg.mxu0
  %915 = vmatprep.subr.mxu0 0.0
  %v916 = vand.u32 %v30, 4294901760
  %v917 = vsub.f32 %v30, %v916
  %v918 = vand.u32 %v917, 4294901760
  %919 = vmatpush1.msra.mxu0 %v918
  %920 = vmatprep.subr.mxu0 0.0
  %v921 = vand.u32 %v31, 4294901760
  %v922 = vsub.f32 %v31, %v921
  %v923 = vand.u32 %v922, 4294901760
  %924 = vmatpush1.msra.mxu0 %v923
  %925 = vmatprep.subr.mxu0 0.0
  %v926 = vand.u32 %v32, 4294901760
  %v927 = vsub.f32 %v32, %v926
  %v928 = vand.u32 %v927, 4294901760
  %929 = vmatpush1.msra.mxu0 %v928
  %930 = vmatprep.subr.mxu0 0.0
  %v931 = vand.u32 %v33, 4294901760
  %v932 = vsub.f32 %v33, %v931
  %v933 = vand.u32 %v932, 4294901760
  %934 = vmatpush1.msra.mxu0 %v933
  %935 = vmatprep.subr.mxu0 0.0
  %v936 = vand.u32 %v34, 4294901760
  %v937 = vsub.f32 %v34, %v936
  %v938 = vand.u32 %v937, 4294901760
  %939 = vmatpush1.msra.mxu0 %v938
  %940 = vmatprep.subr.mxu0 0.0
  %v941 = vand.u32 %v35, 4294901760
  %v942 = vsub.f32 %v35, %v941
  %v943 = vand.u32 %v942, 4294901760
  %944 = vmatpush1.msra.mxu0 %v943
  %945 = vmatprep.subr.mxu0 0.0
  %v946 = vand.u32 %v36, 4294901760
  %v947 = vsub.f32 %v36, %v946
  %v948 = vand.u32 %v947, 4294901760
  %949 = vmatpush1.msra.mxu0 %v948
  %950 = vmatprep.subr.mxu0 0.0
  %v951 = vand.u32 %v37, 4294901760
  %v952 = vsub.f32 %v37, %v951
  %v953 = vand.u32 %v952, 4294901760
  %954 = vmatpush1.msra.mxu0 %v953
  %955 = vmatprep.subr.mxu0 0.0
  %956 = vmatpush1.msra.mxu0 0.0
  %957 = vmatprep.subr.mxu0 0.0
  %958 = vmatpush1.msra.mxu0 0.0
  %959 = vmatprep.subr.mxu0 0.0
  %960 = vmatpush1.msra.mxu0 0.0
  %961 = vmatprep.subr.mxu0 0.0
  %962 = vmatpush1.msra.mxu0 0.0
  %963 = vmatprep.subr.mxu0 0.0
  %964 = vmatpush1.msra.mxu0 0.0
  %965 = vmatprep.subr.mxu0 0.0
  %966 = vmatpush1.msra.mxu0 0.0
  %967 = vmatprep.subr.mxu0 0.0
  %968 = vmatpush1.msra.mxu0 0.0
  %969 = vmatprep.subr.mxu0 0.0
  %970 = vmatpush1.msra.mxu0 0.0
  %971 = vmatprep.subr.mxu0 0.0
  %972 = vmatpush1.msra.mxu0 0.0
  %973 = vmatprep.subr.mxu0 0.0
  %974 = vmatpush1.msra.mxu0 0.0
  %975 = vmatprep.subr.mxu0 0.0
  %976 = vmatpush1.msra.mxu0 0.0
  %977 = vmatprep.subr.mxu0 0.0
  %978 = vmatpush1.msra.mxu0 0.0
  %979 = vmatprep.subr.mxu0 0.0
  %980 = vmatpush1.msra.mxu0 0.0
  %981 = vmatprep.subr.mxu0 0.0
  %982 = vmatpush1.msra.mxu0 0.0
  %983 = vmatprep.subr.mxu0 0.0
  %984 = vmatpush1.msra.mxu0 0.0
  %985 = vmatprep.subr.mxu0 0.0
  %986 = vmatpush1.msra.mxu0 0.0
  %987 = vmatprep.subr.mxu0 0.0
  %988 = vmatpush1.msra.mxu0 0.0
  %989 = vmatprep.subr.mxu0 0.0
  %990 = vmatpush1.msra.mxu0 0.0
  %991 = vmatprep.subr.mxu0 0.0
  %992 = vmatpush1.msra.mxu0 0.0
  %993 = vmatprep.subr.mxu0 0.0
  %994 = vmatpush1.msra.mxu0 0.0
  %995 = vmatprep.subr.mxu0 0.0
  %996 = vmatpush1.msra.mxu0 0.0
  %997 = vmatprep.subr.mxu0 0.0
  %998 = vmatpush1.msra.mxu0 0.0
  %999 = vmatprep.subr.mxu0 0.0
  %1000 = vmatpush1.msra.mxu0 0.0
  %1001 = vmatprep.subr.mxu0 0.0
  %1002 = vmatpush1.msra.mxu0 0.0
  %1003 = vmatprep.mubr.f32.mxu0 0.0
  %v1004 = vand.u32 %v40, 4294901760
  %1005 = vmatmul.mubr.f32.gmra.mrb[0].mxu0 %v1004
  %v1006 = vpop.f32.mrb[0].mxu0
  %v1007 = vadd.f32 %v792, %v1006
  %v1008 = vpop.f32.mrb[0].mxu0
  %1009 = vmatprep.mubr.f32.mxu0 0.0
  %v1010 = vand.u32 %v43, 4294901760
  %1011 = vmatmul.mubr.f32.gmra.mrb[0].mxu0 %v1010
  %v1012 = vpop.f32.mrb[0].mxu0
  %v1013 = vadd.f32 %v800, %v1012
  %v1014 = vpop.f32.mrb[0].mxu0
  %1015 = vmatprep.mubr.f32.mxu0 0.0
  %v1016 = vand.u32 %v46, 4294901760
  %1017 = vmatmul.mubr.f32.gmra.mrb[0].mxu0 %v1016
  %v1018 = vpop.f32.mrb[0].mxu0
  %v1019 = vadd.f32 %v808, %v1018
  %v1020 = vpop.f32.mrb[0].mxu0
  %1021 = vmatprep.mubr.f32.mxu0 0.0
  %v1022 = vand.u32 %v49, 4294901760
  %1023 = vmatmul.mubr.f32.gmra.mrb[0].mxu0 %v1022
  %v1024 = vpop.f32.mrb[0].mxu0
  %v1025 = vadd.f32 %v816, %v1024
  %v1026 = vpop.f32.mrb[0].mxu0
  %1027 = vmatprep.mubr.f32.mxu0 0.0
  %v1028 = vand.u32 %v52, 4294901760
  %1029 = vmatmul.mubr.f32.gmra.mrb[0].mxu0 %v1028
  %v1030 = vpop.f32.mrb[0].mxu0
  %v1031 = vadd.f32 %v824, %v1030
  %v1032 = vpop.f32.mrb[0].mxu0
  %1033 = vmatprep.mubr.f32.mxu0 0.0
  %v1034 = vand.u32 %v55, 4294901760
  %1035 = vmatmul.mubr.f32.gmra.mrb[0].mxu0 %v1034
  %v1036 = vpop.f32.mrb[0].mxu0
  %v1037 = vadd.f32 %v832, %v1036
  %v1038 = vpop.f32.mrb[0].mxu0
  %1039 = vmatprep.mubr.f32.mxu0 0.0
  %v1040 = vand.u32 %v58, 4294901760
  %1041 = vmatmul.mubr.f32.gmra.mrb[0].mxu0 %v1040
  %v1042 = vpop.f32.mrb[0].mxu0
  %v1043 = vadd.f32 %v840, %v1042
  %v1044 = vpop.f32.mrb[0].mxu0
  %1045 = vmatprep.mubr.f32.mxu0 0.0
  %v1046 = vand.u32 %v61, 4294901760
  %1047 = vmatmul.mubr.f32.gmra.mrb[0].mxu0 %v1046
  %v1048 = vpop.f32.mrb[0].mxu0
  %v1049 = vadd.f32 %v848, %v1048
  %v1050 = vpop.f32.mrb[0].mxu0
  %1051 = vmatprep.mubr.f32.mxu0 0.0
  %v1052 = vand.u32 %v64, 4294901760
  %1053 = vmatmul.mubr.f32.gmra.mrb[0].mxu0 %v1052
  %v1054 = vpop.f32.mrb[0].mxu0
  %v1055 = vadd.f32 %v856, %v1054
  %v1056 = vpop.f32.mrb[0].mxu0
  %1057 = vmatprep.mubr.f32.mxu0 0.0
  %v1058 = vand.u32 %v67, 4294901760
  %1059 = vmatmul.mubr.f32.gmra.mrb[0].mxu0 %v1058
  %v1060 = vpop.f32.mrb[0].mxu0
  %v1061 = vadd.f32 %v864, %v1060
  %v1062 = vpop.f32.mrb[0].mxu0
  %1063 = vmatprep.mubr.f32.mxu0 0.0
  %v1064 = vand.u32 %v70, 4294901760
  %1065 = vmatmul.mubr.f32.gmra.mrb[0].mxu0 %v1064
  %v1066 = vpop.f32.mrb[0].mxu0
  %v1067 = vadd.f32 %v872, %v1066
  %v1068 = vpop.f32.mrb[0].mxu0
  %1069 = vmatprep.mubr.f32.mxu0 0.0
  %v1070 = vand.u32 %v73, 4294901760
  %1071 = vmatmul.mubr.f32.gmra.mrb[0].mxu0 %v1070
  %v1072 = vpop.f32.mrb[0].mxu0
  %v1073 = vadd.f32 %v880, %v1072
  %v1074 = vpop.f32.mrb[0].mxu0
  %1075 = vmatprep.mubr.f32.mxu0 0.0
  %v1076 = vand.u32 %v76, 4294901760
  %1077 = vmatmul.mubr.f32.gmra.mrb[0].mxu0 %v1076
  %v1078 = vpop.f32.mrb[0].mxu0
  %v1079 = vadd.f32 %v888, %v1078
  %v1080 = vpop.f32.mrb[0].mxu0
  %1081 = vmatprep.mubr.f32.mxu0 0.0
  %v1082 = vand.u32 %v79, 4294901760
  %1083 = vmatmul.mubr.f32.gmra.mrb[0].mxu0 %v1082
  %v1084 = vpop.f32.mrb[0].mxu0
  %v1085 = vadd.f32 %v896, %v1084
  %v1086 = vpop.f32.mrb[0].mxu0
  %1087 = vmatprep.mubr.f32.mxu0 0.0
  %v1088 = vand.u32 %v82, 4294901760
  %1089 = vmatmul.mubr.f32.gmra.mrb[0].mxu0 %v1088
  %v1090 = vpop.f32.mrb[0].mxu0
  %v1091 = vadd.f32 %v904, %v1090
  %v1092 = vpop.f32.mrb[0].mxu0
  %1093 = vmatprep.mubr.f32.mxu0 0.0
  %v1094 = vand.u32 %v85, 4294901760
  %1095 = vmatmul.mubr.f32.gmra.mrb[0].mxu0 %v1094
  %v1096 = vpop.f32.mrb[0].mxu0
  %v1097 = vadd.f32 %v912, %v1096
  %v1098 = vpop.f32.mrb[0].mxu0
  %1099 = vdwg.mxu0
  %1100 = vmatprep.subr.mxu0 0.0
  %v1101 = vand.u32 %v30, 4294901760
  %1102 = vmatpush1.msra.mxu0 %v1101
  %1103 = vmatprep.subr.mxu0 0.0
  %v1104 = vand.u32 %v31, 4294901760
  %1105 = vmatpush1.msra.mxu0 %v1104
  %1106 = vmatprep.subr.mxu0 0.0
  %v1107 = vand.u32 %v32, 4294901760
  %1108 = vmatpush1.msra.mxu0 %v1107
  %1109 = vmatprep.subr.mxu0 0.0
  %v1110 = vand.u32 %v33, 4294901760
  %1111 = vmatpush1.msra.mxu0 %v1110
  %1112 = vmatprep.subr.mxu0 0.0
  %v1113 = vand.u32 %v34, 4294901760
  %1114 = vmatpush1.msra.mxu0 %v1113
  %1115 = vmatprep.subr.mxu0 0.0
  %v1116 = vand.u32 %v35, 4294901760
  %1117 = vmatpush1.msra.mxu0 %v1116
  %1118 = vmatprep.subr.mxu0 0.0
  %v1119 = vand.u32 %v36, 4294901760
  %1120 = vmatpush1.msra.mxu0 %v1119
  %1121 = vmatprep.subr.mxu0 0.0
  %v1122 = vand.u32 %v37, 4294901760
  %1123 = vmatpush1.msra.mxu0 %v1122
  %1124 = vmatprep.subr.mxu0 0.0
  %1125 = vmatpush1.msra.mxu0 0.0
  %1126 = vmatprep.subr.mxu0 0.0
  %1127 = vmatpush1.msra.mxu0 0.0
  %1128 = vmatprep.subr.mxu0 0.0
  %1129 = vmatpush1.msra.mxu0 0.0
  %1130 = vmatprep.subr.mxu0 0.0
  %1131 = vmatpush1.msra.mxu0 0.0
  %1132 = vmatprep.subr.mxu0 0.0
  %1133 = vmatpush1.msra.mxu0 0.0
  %1134 = vmatprep.subr.mxu0 0.0
  %1135 = vmatpush1.msra.mxu0 0.0
  %1136 = vmatprep.subr.mxu0 0.0
  %1137 = vmatpush1.msra.mxu0 0.0
  %1138 = vmatprep.subr.mxu0 0.0
  %1139 = vmatpush1.msra.mxu0 0.0
  %1140 = vmatprep.subr.mxu0 0.0
  %1141 = vmatpush1.msra.mxu0 0.0
  %1142 = vmatprep.subr.mxu0 0.0
  %1143 = vmatpush1.msra.mxu0 0.0
  %1144 = vmatprep.subr.mxu0 0.0
  %1145 = vmatpush1.msra.mxu0 0.0
  %1146 = vmatprep.subr.mxu0 0.0
  %1147 = vmatpush1.msra.mxu0 0.0
  %1148 = vmatprep.subr.mxu0 0.0
  %1149 = vmatpush1.msra.mxu0 0.0
  %1150 = vmatprep.subr.mxu0 0.0
  %1151 = vmatpush1.msra.mxu0 0.0
  %1152 = vmatprep.subr.mxu0 0.0
  %1153 = vmatpush1.msra.mxu0 0.0
  %1154 = vmatprep.subr.mxu0 0.0
  %1155 = vmatpush1.msra.mxu0 0.0
  %1156 = vmatprep.subr.mxu0 0.0
  %1157 = vmatpush1.msra.mxu0 0.0
  %1158 = vmatprep.subr.mxu0 0.0
  %1159 = vmatpush1.msra.mxu0 0.0
  %1160 = vmatprep.subr.mxu0 0.0
  %1161 = vmatpush1.msra.mxu0 0.0
  %1162 = vmatprep.subr.mxu0 0.0
  %1163 = vmatpush1.msra.mxu0 0.0
  %1164 = vmatprep.subr.mxu0 0.0
  %1165 = vmatpush1.msra.mxu0 0.0
  %1166 = vmatprep.subr.mxu0 0.0
  %1167 = vmatpush1.msra.mxu0 0.0
  %1168 = vmatprep.subr.mxu0 0.0
  %1169 = vmatpush1.msra.mxu0 0.0
  %1170 = vmatprep.subr.mxu0 0.0
  %1171 = vmatpush1.msra.mxu0 0.0
  %1172 = vmatprep.mubr.f32.mxu0 0.0
  %v1173 = vand.u32 %v40, 4294901760
  %1174 = vmatmul.mubr.f32.gmra.mrb[0].mxu0 %v1173
  %v1175 = vpop.f32.mrb[0].mxu0
  %v1176 = vadd.f32 %v1007, %v1175
  %v1177 = vpop.f32.mrb[0].mxu0
  %1178 = vmatprep.mubr.f32.mxu0 0.0
  %v1179 = vand.u32 %v43, 4294901760
  %1180 = vmatmul.mubr.f32.gmra.mrb[0].mxu0 %v1179
  %v1181 = vpop.f32.mrb[0].mxu0
  %v1182 = vadd.f32 %v1013, %v1181
  %v1183 = vpop.f32.mrb[0].mxu0
  %1184 = vmatprep.mubr.f32.mxu0 0.0
  %v1185 = vand.u32 %v46, 4294901760
  %1186 = vmatmul.mubr.f32.gmra.mrb[0].mxu0 %v1185
  %v1187 = vpop.f32.mrb[0].mxu0
  %v1188 = vadd.f32 %v1019, %v1187
  %v1189 = vpop.f32.mrb[0].mxu0
  %1190 = vmatprep.mubr.f32.mxu0 0.0
  %v1191 = vand.u32 %v49, 4294901760
  %1192 = vmatmul.mubr.f32.gmra.mrb[0].mxu0 %v1191
  %v1193 = vpop.f32.mrb[0].mxu0
  %v1194 = vadd.f32 %v1025, %v1193
  %v1195 = vpop.f32.mrb[0].mxu0
  %1196 = vmatprep.mubr.f32.mxu0 0.0
  %v1197 = vand.u32 %v52, 4294901760
  %1198 = vmatmul.mubr.f32.gmra.mrb[0].mxu0 %v1197
  %v1199 = vpop.f32.mrb[0].mxu0
  %v1200 = vadd.f32 %v1031, %v1199
  %v1201 = vpop.f32.mrb[0].mxu0
  %1202 = vmatprep.mubr.f32.mxu0 0.0
  %v1203 = vand.u32 %v55, 4294901760
  %1204 = vmatmul.mubr.f32.gmra.mrb[0].mxu0 %v1203
  %v1205 = vpop.f32.mrb[0].mxu0
  %v1206 = vadd.f32 %v1037, %v1205
  %v1207 = vpop.f32.mrb[0].mxu0
  %1208 = vmatprep.mubr.f32.mxu0 0.0
  %v1209 = vand.u32 %v58, 4294901760
  %1210 = vmatmul.mubr.f32.gmra.mrb[0].mxu0 %v1209
  %v1211 = vpop.f32.mrb[0].mxu0
  %v1212 = vadd.f32 %v1043, %v1211
  %v1213 = vpop.f32.mrb[0].mxu0
  %1214 = vmatprep.mubr.f32.mxu0 0.0
  %v1215 = vand.u32 %v61, 4294901760
  %1216 = vmatmul.mubr.f32.gmra.mrb[0].mxu0 %v1215
  %v1217 = vpop.f32.mrb[0].mxu0
  %v1218 = vadd.f32 %v1049, %v1217
  %v1219 = vpop.f32.mrb[0].mxu0
  %1220 = vmatprep.mubr.f32.mxu0 0.0
  %v1221 = vand.u32 %v64, 4294901760
  %1222 = vmatmul.mubr.f32.gmra.mrb[0].mxu0 %v1221
  %v1223 = vpop.f32.mrb[0].mxu0
  %v1224 = vadd.f32 %v1055, %v1223
  %v1225 = vpop.f32.mrb[0].mxu0
  %1226 = vmatprep.mubr.f32.mxu0 0.0
  %v1227 = vand.u32 %v67, 4294901760
  %1228 = vmatmul.mubr.f32.gmra.mrb[0].mxu0 %v1227
  %v1229 = vpop.f32.mrb[0].mxu0
  %v1230 = vadd.f32 %v1061, %v1229
  %v1231 = vpop.f32.mrb[0].mxu0
  %1232 = vmatprep.mubr.f32.mxu0 0.0
  %v1233 = vand.u32 %v70, 4294901760
  %1234 = vmatmul.mubr.f32.gmra.mrb[0].mxu0 %v1233
  %v1235 = vpop.f32.mrb[0].mxu0
  %v1236 = vadd.f32 %v1067, %v1235
  %v1237 = vpop.f32.mrb[0].mxu0
  %1238 = vmatprep.mubr.f32.mxu0 0.0
  %v1239 = vand.u32 %v73, 4294901760
  %1240 = vmatmul.mubr.f32.gmra.mrb[0].mxu0 %v1239
  %v1241 = vpop.f32.mrb[0].mxu0
  %v1242 = vadd.f32 %v1073, %v1241
  %v1243 = vpop.f32.mrb[0].mxu0
  %1244 = vmatprep.mubr.f32.mxu0 0.0
  %v1245 = vand.u32 %v76, 4294901760
  %1246 = vmatmul.mubr.f32.gmra.mrb[0].mxu0 %v1245
  %v1247 = vpop.f32.mrb[0].mxu0
  %v1248 = vadd.f32 %v1079, %v1247
  %v1249 = vpop.f32.mrb[0].mxu0
  %1250 = vmatprep.mubr.f32.mxu0 0.0
  %v1251 = vand.u32 %v79, 4294901760
  %1252 = vmatmul.mubr.f32.gmra.mrb[0].mxu0 %v1251
  %v1253 = vpop.f32.mrb[0].mxu0
  %v1254 = vadd.f32 %v1085, %v1253
  %v1255 = vpop.f32.mrb[0].mxu0
  %1256 = vmatprep.mubr.f32.mxu0 0.0
  %v1257 = vand.u32 %v82, 4294901760
  %1258 = vmatmul.mubr.f32.gmra.mrb[0].mxu0 %v1257
  %v1259 = vpop.f32.mrb[0].mxu0
  %v1260 = vadd.f32 %v1091, %v1259
  %v1261 = vpop.f32.mrb[0].mxu0
  %1262 = vmatprep.mubr.f32.mxu0 0.0
  %v1263 = vand.u32 %v85, 4294901760
  %1264 = vmatmul.mubr.f32.gmra.mrb[0].mxu0 %v1263
  %v1265 = vpop.f32.mrb[0].mxu0
  %v1266 = vadd.f32 %v1097, %v1265
  %v1267 = vpop.f32.mrb[0].mxu0
  %1268 = vdwg.mxu0
  %v1269 = vmul.f32 %v14, %v1176
  %v1270 = vmul.f32 %v15, %v1182
  %v1271 = vmul.f32 %v16, %v1188
  %v1272 = vmul.f32 %v17, %v1194
  %v1273 = vmul.f32 %v18, %v1200
  %v1274 = vmul.f32 %v19, %v1206
  %v1275 = vmul.f32 %v20, %v1212
  %v1276 = vmul.f32 %v21, %v1218
  %v1277 = vmul.f32 %v22, %v1224
  %v1278 = vmul.f32 %v23, %v1230
  %v1279 = vmul.f32 %v24, %v1236
  %v1280 = vmul.f32 %v25, %v1242
  %v1281 = vmul.f32 %v26, %v1248
  %v1282 = vmul.f32 %v27, %v1254
  %v1283 = vmul.f32 %v28, %v1260
  %v1284 = vmul.f32 %v29, %v1266
  %v1285 = vld [vmem:[%s2] sm:$0xff]
  %v1286 = vld [vmem:[%s2 + $0x8] sm:$0xff]
  %v1287 = vld [vmem:[%s2 + $0x10] sm:$0xff]
  %v1288 = vld [vmem:[%s2 + $0x18] sm:$0xff]
  %v1289 = vld [vmem:[%s2 + $0x20] sm:$0xff]
  %v1290 = vld [vmem:[%s2 + $0x28] sm:$0xff]
  %v1291 = vld [vmem:[%s2 + $0x30] sm:$0xff]
  %v1292 = vld [vmem:[%s2 + $0x38] sm:$0xff]
  %v1294 = vsel %vm38, %v1269, 0
  %v1297 = vsel %vm38, %v1270, 0
  %v1300 = vsel %vm38, %v1271, 0
  %v1303 = vsel %vm38, %v1272, 0
  %v1306 = vsel %vm38, %v1273, 0
  %v1309 = vsel %vm38, %v1274, 0
  %v1312 = vsel %vm38, %v1275, 0
  %v1315 = vsel %vm38, %v1276, 0
  %v1318 = vsel %vm38, %v1277, 0
  %v1321 = vsel %vm38, %v1278, 0
  %v1324 = vsel %vm38, %v1279, 0
  %v1327 = vsel %vm38, %v1280, 0
  %v1330 = vsel %vm38, %v1281, 0
  %v1333 = vsel %vm38, %v1282, 0
  %v1336 = vsel %vm38, %v1283, 0
  %v1339 = vsel %vm38, %v1284, 0
  %1341 = vmatprep.subr.mxu0 0.0
  %v1342 = vand.u32 %v1285, 4294901760
  %1343 = vmatpush1.msra.mxu0 %v1342
  %1344 = vmatprep.subr.mxu0 0.0
  %v1345 = vand.u32 %v1286, 4294901760
  %1346 = vmatpush1.msra.mxu0 %v1345
  %1347 = vmatprep.subr.mxu0 0.0
  %v1348 = vand.u32 %v1287, 4294901760
  %1349 = vmatpush1.msra.mxu0 %v1348
  %1350 = vmatprep.subr.mxu0 0.0
  %v1351 = vand.u32 %v1288, 4294901760
  %1352 = vmatpush1.msra.mxu0 %v1351
  %1353 = vmatprep.subr.mxu0 0.0
  %v1354 = vand.u32 %v1289, 4294901760
  %1355 = vmatpush1.msra.mxu0 %v1354
  %1356 = vmatprep.subr.mxu0 0.0
  %v1357 = vand.u32 %v1290, 4294901760
  %1358 = vmatpush1.msra.mxu0 %v1357
  %1359 = vmatprep.subr.mxu0 0.0
  %v1360 = vand.u32 %v1291, 4294901760
  %1361 = vmatpush1.msra.mxu0 %v1360
  %1362 = vmatprep.subr.mxu0 0.0
  %v1363 = vand.u32 %v1292, 4294901760
  %1364 = vmatpush1.msra.mxu0 %v1363
  %1365 = vmatprep.subr.mxu0 0.0
  %1366 = vmatpush1.msra.mxu0 0.0
  %1367 = vmatprep.subr.mxu0 0.0
  %1368 = vmatpush1.msra.mxu0 0.0
  %1369 = vmatprep.subr.mxu0 0.0
  %1370 = vmatpush1.msra.mxu0 0.0
  %1371 = vmatprep.subr.mxu0 0.0
  %1372 = vmatpush1.msra.mxu0 0.0
  %1373 = vmatprep.subr.mxu0 0.0
  %1374 = vmatpush1.msra.mxu0 0.0
  %1375 = vmatprep.subr.mxu0 0.0
  %1376 = vmatpush1.msra.mxu0 0.0
  %1377 = vmatprep.subr.mxu0 0.0
  %1378 = vmatpush1.msra.mxu0 0.0
  %1379 = vmatprep.subr.mxu0 0.0
  %1380 = vmatpush1.msra.mxu0 0.0
  %1381 = vmatprep.subr.mxu0 0.0
  %1382 = vmatpush1.msra.mxu0 0.0
  %1383 = vmatprep.subr.mxu0 0.0
  %1384 = vmatpush1.msra.mxu0 0.0
  %1385 = vmatprep.subr.mxu0 0.0
  %1386 = vmatpush1.msra.mxu0 0.0
  %1387 = vmatprep.subr.mxu0 0.0
  %1388 = vmatpush1.msra.mxu0 0.0
  %1389 = vmatprep.subr.mxu0 0.0
  %1390 = vmatpush1.msra.mxu0 0.0
  %1391 = vmatprep.subr.mxu0 0.0
  %1392 = vmatpush1.msra.mxu0 0.0
  %1393 = vmatprep.subr.mxu0 0.0
  %1394 = vmatpush1.msra.mxu0 0.0
  %1395 = vmatprep.subr.mxu0 0.0
  %1396 = vmatpush1.msra.mxu0 0.0
  %1397 = vmatprep.subr.mxu0 0.0
  %1398 = vmatpush1.msra.mxu0 0.0
  %1399 = vmatprep.subr.mxu0 0.0
  %1400 = vmatpush1.msra.mxu0 0.0
  %1401 = vmatprep.subr.mxu0 0.0
  %1402 = vmatpush1.msra.mxu0 0.0
  %1403 = vmatprep.subr.mxu0 0.0
  %1404 = vmatpush1.msra.mxu0 0.0
  %1405 = vmatprep.subr.mxu0 0.0
  %1406 = vmatpush1.msra.mxu0 0.0
  %1407 = vmatprep.subr.mxu0 0.0
  %1408 = vmatpush1.msra.mxu0 0.0
  %1409 = vmatprep.subr.mxu0 0.0
  %1410 = vmatpush1.msra.mxu0 0.0
  %1411 = vmatprep.subr.mxu0 0.0
  %1412 = vmatpush1.msra.mxu0 0.0
  %1413 = vmatprep.mubr.f32.mxu0 0.0
  %v1414 = vand.u32 %v1294, 4294901760
  %v1415 = vsub.f32 %v1294, %v1414
  %v1416 = vand.u32 %v1415, 4294901760
  %v1417 = vsub.f32 %v1415, %v1416
  %v1418 = vand.u32 %v1417, 4294901760
  %1419 = vmatmul.mubr.f32.gmra.mrb[0].mxu0 %v1418
  %v1420 = vpop.f32.mrb[0].mxu0
  %v1421 = vadd.f32 0.0, %v1420
  %v1422 = vpop.f32.mrb[0].mxu0
  %1423 = vmatprep.mubr.f32.mxu0 0.0
  %v1424 = vand.u32 %v1297, 4294901760
  %v1425 = vsub.f32 %v1297, %v1424
  %v1426 = vand.u32 %v1425, 4294901760
  %v1427 = vsub.f32 %v1425, %v1426
  %v1428 = vand.u32 %v1427, 4294901760
  %1429 = vmatmul.mubr.f32.gmra.mrb[0].mxu0 %v1428
  %v1430 = vpop.f32.mrb[0].mxu0
  %v1431 = vadd.f32 0.0, %v1430
  %v1432 = vpop.f32.mrb[0].mxu0
  %1433 = vmatprep.mubr.f32.mxu0 0.0
  %v1434 = vand.u32 %v1300, 4294901760
  %v1435 = vsub.f32 %v1300, %v1434
  %v1436 = vand.u32 %v1435, 4294901760
  %v1437 = vsub.f32 %v1435, %v1436
  %v1438 = vand.u32 %v1437, 4294901760
  %1439 = vmatmul.mubr.f32.gmra.mrb[0].mxu0 %v1438
  %v1440 = vpop.f32.mrb[0].mxu0
  %v1441 = vadd.f32 0.0, %v1440
  %v1442 = vpop.f32.mrb[0].mxu0
  %1443 = vmatprep.mubr.f32.mxu0 0.0
  %v1444 = vand.u32 %v1303, 4294901760
  %v1445 = vsub.f32 %v1303, %v1444
  %v1446 = vand.u32 %v1445, 4294901760
  %v1447 = vsub.f32 %v1445, %v1446
  %v1448 = vand.u32 %v1447, 4294901760
  %1449 = vmatmul.mubr.f32.gmra.mrb[0].mxu0 %v1448
  %v1450 = vpop.f32.mrb[0].mxu0
  %v1451 = vadd.f32 0.0, %v1450
  %v1452 = vpop.f32.mrb[0].mxu0
  %1453 = vmatprep.mubr.f32.mxu0 0.0
  %v1454 = vand.u32 %v1306, 4294901760
  %v1455 = vsub.f32 %v1306, %v1454
  %v1456 = vand.u32 %v1455, 4294901760
  %v1457 = vsub.f32 %v1455, %v1456
  %v1458 = vand.u32 %v1457, 4294901760
  %1459 = vmatmul.mubr.f32.gmra.mrb[0].mxu0 %v1458
  %v1460 = vpop.f32.mrb[0].mxu0
  %v1461 = vadd.f32 0.0, %v1460
  %v1462 = vpop.f32.mrb[0].mxu0
  %1463 = vmatprep.mubr.f32.mxu0 0.0
  %v1464 = vand.u32 %v1309, 4294901760
  %v1465 = vsub.f32 %v1309, %v1464
  %v1466 = vand.u32 %v1465, 4294901760
  %v1467 = vsub.f32 %v1465, %v1466
  %v1468 = vand.u32 %v1467, 4294901760
  %1469 = vmatmul.mubr.f32.gmra.mrb[0].mxu0 %v1468
  %v1470 = vpop.f32.mrb[0].mxu0
  %v1471 = vadd.f32 0.0, %v1470
  %v1472 = vpop.f32.mrb[0].mxu0
  %1473 = vmatprep.mubr.f32.mxu0 0.0
  %v1474 = vand.u32 %v1312, 4294901760
  %v1475 = vsub.f32 %v1312, %v1474
  %v1476 = vand.u32 %v1475, 4294901760
  %v1477 = vsub.f32 %v1475, %v1476
  %v1478 = vand.u32 %v1477, 4294901760
  %1479 = vmatmul.mubr.f32.gmra.mrb[0].mxu0 %v1478
  %v1480 = vpop.f32.mrb[0].mxu0
  %v1481 = vadd.f32 0.0, %v1480
  %v1482 = vpop.f32.mrb[0].mxu0
  %1483 = vmatprep.mubr.f32.mxu0 0.0
  %v1484 = vand.u32 %v1315, 4294901760
  %v1485 = vsub.f32 %v1315, %v1484
  %v1486 = vand.u32 %v1485, 4294901760
  %v1487 = vsub.f32 %v1485, %v1486
  %v1488 = vand.u32 %v1487, 4294901760
  %1489 = vmatmul.mubr.f32.gmra.mrb[0].mxu0 %v1488
  %v1490 = vpop.f32.mrb[0].mxu0
  %v1491 = vadd.f32 0.0, %v1490
  %v1492 = vpop.f32.mrb[0].mxu0
  %1493 = vmatprep.mubr.f32.mxu0 0.0
  %v1494 = vand.u32 %v1318, 4294901760
  %v1495 = vsub.f32 %v1318, %v1494
  %v1496 = vand.u32 %v1495, 4294901760
  %v1497 = vsub.f32 %v1495, %v1496
  %v1498 = vand.u32 %v1497, 4294901760
  %1499 = vmatmul.mubr.f32.gmra.mrb[0].mxu0 %v1498
  %v1500 = vpop.f32.mrb[0].mxu0
  %v1501 = vadd.f32 0.0, %v1500
  %v1502 = vpop.f32.mrb[0].mxu0
  %1503 = vmatprep.mubr.f32.mxu0 0.0
  %v1504 = vand.u32 %v1321, 4294901760
  %v1505 = vsub.f32 %v1321, %v1504
  %v1506 = vand.u32 %v1505, 4294901760
  %v1507 = vsub.f32 %v1505, %v1506
  %v1508 = vand.u32 %v1507, 4294901760
  %1509 = vmatmul.mubr.f32.gmra.mrb[0].mxu0 %v1508
  %v1510 = vpop.f32.mrb[0].mxu0
  %v1511 = vadd.f32 0.0, %v1510
  %v1512 = vpop.f32.mrb[0].mxu0
  %1513 = vmatprep.mubr.f32.mxu0 0.0
  %v1514 = vand.u32 %v1324, 4294901760
  %v1515 = vsub.f32 %v1324, %v1514
  %v1516 = vand.u32 %v1515, 4294901760
  %v1517 = vsub.f32 %v1515, %v1516
  %v1518 = vand.u32 %v1517, 4294901760
  %1519 = vmatmul.mubr.f32.gmra.mrb[0].mxu0 %v1518
  %v1520 = vpop.f32.mrb[0].mxu0
  %v1521 = vadd.f32 0.0, %v1520
  %v1522 = vpop.f32.mrb[0].mxu0
  %1523 = vmatprep.mubr.f32.mxu0 0.0
  %v1524 = vand.u32 %v1327, 4294901760
  %v1525 = vsub.f32 %v1327, %v1524
  %v1526 = vand.u32 %v1525, 4294901760
  %v1527 = vsub.f32 %v1525, %v1526
  %v1528 = vand.u32 %v1527, 4294901760
  %1529 = vmatmul.mubr.f32.gmra.mrb[0].mxu0 %v1528
  %v1530 = vpop.f32.mrb[0].mxu0
  %v1531 = vadd.f32 0.0, %v1530
  %v1532 = vpop.f32.mrb[0].mxu0
  %1533 = vmatprep.mubr.f32.mxu0 0.0
  %v1534 = vand.u32 %v1330, 4294901760
  %v1535 = vsub.f32 %v1330, %v1534
  %v1536 = vand.u32 %v1535, 4294901760
  %v1537 = vsub.f32 %v1535, %v1536
  %v1538 = vand.u32 %v1537, 4294901760
  %1539 = vmatmul.mubr.f32.gmra.mrb[0].mxu0 %v1538
  %v1540 = vpop.f32.mrb[0].mxu0
  %v1541 = vadd.f32 0.0, %v1540
  %v1542 = vpop.f32.mrb[0].mxu0
  %1543 = vmatprep.mubr.f32.mxu0 0.0
  %v1544 = vand.u32 %v1333, 4294901760
  %v1545 = vsub.f32 %v1333, %v1544
  %v1546 = vand.u32 %v1545, 4294901760
  %v1547 = vsub.f32 %v1545, %v1546
  %v1548 = vand.u32 %v1547, 4294901760
  %1549 = vmatmul.mubr.f32.gmra.mrb[0].mxu0 %v1548
  %v1550 = vpop.f32.mrb[0].mxu0
  %v1551 = vadd.f32 0.0, %v1550
  %v1552 = vpop.f32.mrb[0].mxu0
  %1553 = vmatprep.mubr.f32.mxu0 0.0
  %v1554 = vand.u32 %v1336, 4294901760
  %v1555 = vsub.f32 %v1336, %v1554
  %v1556 = vand.u32 %v1555, 4294901760
  %v1557 = vsub.f32 %v1555, %v1556
  %v1558 = vand.u32 %v1557, 4294901760
  %1559 = vmatmul.mubr.f32.gmra.mrb[0].mxu0 %v1558
  %v1560 = vpop.f32.mrb[0].mxu0
  %v1561 = vadd.f32 0.0, %v1560
  %v1562 = vpop.f32.mrb[0].mxu0
  %1563 = vmatprep.mubr.f32.mxu0 0.0
  %v1564 = vand.u32 %v1339, 4294901760
  %v1565 = vsub.f32 %v1339, %v1564
  %v1566 = vand.u32 %v1565, 4294901760
  %v1567 = vsub.f32 %v1565, %v1566
  %v1568 = vand.u32 %v1567, 4294901760
  %1569 = vmatmul.mubr.f32.gmra.mrb[0].mxu0 %v1568
  %v1570 = vpop.f32.mrb[0].mxu0
  %v1571 = vadd.f32 0.0, %v1570
  %v1572 = vpop.f32.mrb[0].mxu0
  %1573 = vdwg.mxu0
  %1574 = vmatprep.subr.mxu0 0.0
  %v1575 = vand.u32 %v1285, 4294901760
  %v1576 = vsub.f32 %v1285, %v1575
  %v1577 = vand.u32 %v1576, 4294901760
  %v1578 = vsub.f32 %v1576, %v1577
  %v1579 = vand.u32 %v1578, 4294901760
  %1580 = vmatpush1.msra.mxu0 %v1579
  %1581 = vmatprep.subr.mxu0 0.0
  %v1582 = vand.u32 %v1286, 4294901760
  %v1583 = vsub.f32 %v1286, %v1582
  %v1584 = vand.u32 %v1583, 4294901760
  %v1585 = vsub.f32 %v1583, %v1584
  %v1586 = vand.u32 %v1585, 4294901760
  %1587 = vmatpush1.msra.mxu0 %v1586
  %1588 = vmatprep.subr.mxu0 0.0
  %v1589 = vand.u32 %v1287, 4294901760
  %v1590 = vsub.f32 %v1287, %v1589
  %v1591 = vand.u32 %v1590, 4294901760
  %v1592 = vsub.f32 %v1590, %v1591
  %v1593 = vand.u32 %v1592, 4294901760
  %1594 = vmatpush1.msra.mxu0 %v1593
  %1595 = vmatprep.subr.mxu0 0.0
  %v1596 = vand.u32 %v1288, 4294901760
  %v1597 = vsub.f32 %v1288, %v1596
  %v1598 = vand.u32 %v1597, 4294901760
  %v1599 = vsub.f32 %v1597, %v1598
  %v1600 = vand.u32 %v1599, 4294901760
  %1601 = vmatpush1.msra.mxu0 %v1600
  %1602 = vmatprep.subr.mxu0 0.0
  %v1603 = vand.u32 %v1289, 4294901760
  %v1604 = vsub.f32 %v1289, %v1603
  %v1605 = vand.u32 %v1604, 4294901760
  %v1606 = vsub.f32 %v1604, %v1605
  %v1607 = vand.u32 %v1606, 4294901760
  %1608 = vmatpush1.msra.mxu0 %v1607
  %1609 = vmatprep.subr.mxu0 0.0
  %v1610 = vand.u32 %v1290, 4294901760
  %v1611 = vsub.f32 %v1290, %v1610
  %v1612 = vand.u32 %v1611, 4294901760
  %v1613 = vsub.f32 %v1611, %v1612
  %v1614 = vand.u32 %v1613, 4294901760
  %1615 = vmatpush1.msra.mxu0 %v1614
  %1616 = vmatprep.subr.mxu0 0.0
  %v1617 = vand.u32 %v1291, 4294901760
  %v1618 = vsub.f32 %v1291, %v1617
  %v1619 = vand.u32 %v1618, 4294901760
  %v1620 = vsub.f32 %v1618, %v1619
  %v1621 = vand.u32 %v1620, 4294901760
  %1622 = vmatpush1.msra.mxu0 %v1621
  %1623 = vmatprep.subr.mxu0 0.0
  %v1624 = vand.u32 %v1292, 4294901760
  %v1625 = vsub.f32 %v1292, %v1624
  %v1626 = vand.u32 %v1625, 4294901760
  %v1627 = vsub.f32 %v1625, %v1626
  %v1628 = vand.u32 %v1627, 4294901760
  %1629 = vmatpush1.msra.mxu0 %v1628
  %1630 = vmatprep.subr.mxu0 0.0
  %1631 = vmatpush1.msra.mxu0 0.0
  %1632 = vmatprep.subr.mxu0 0.0
  %1633 = vmatpush1.msra.mxu0 0.0
  %1634 = vmatprep.subr.mxu0 0.0
  %1635 = vmatpush1.msra.mxu0 0.0
  %1636 = vmatprep.subr.mxu0 0.0
  %1637 = vmatpush1.msra.mxu0 0.0
  %1638 = vmatprep.subr.mxu0 0.0
  %1639 = vmatpush1.msra.mxu0 0.0
  %1640 = vmatprep.subr.mxu0 0.0
  %1641 = vmatpush1.msra.mxu0 0.0
  %1642 = vmatprep.subr.mxu0 0.0
  %1643 = vmatpush1.msra.mxu0 0.0
  %1644 = vmatprep.subr.mxu0 0.0
  %1645 = vmatpush1.msra.mxu0 0.0
  %1646 = vmatprep.subr.mxu0 0.0
  %1647 = vmatpush1.msra.mxu0 0.0
  %1648 = vmatprep.subr.mxu0 0.0
  %1649 = vmatpush1.msra.mxu0 0.0
  %1650 = vmatprep.subr.mxu0 0.0
  %1651 = vmatpush1.msra.mxu0 0.0
  %1652 = vmatprep.subr.mxu0 0.0
  %1653 = vmatpush1.msra.mxu0 0.0
  %1654 = vmatprep.subr.mxu0 0.0
  %1655 = vmatpush1.msra.mxu0 0.0
  %1656 = vmatprep.subr.mxu0 0.0
  %1657 = vmatpush1.msra.mxu0 0.0
  %1658 = vmatprep.subr.mxu0 0.0
  %1659 = vmatpush1.msra.mxu0 0.0
  %1660 = vmatprep.subr.mxu0 0.0
  %1661 = vmatpush1.msra.mxu0 0.0
  %1662 = vmatprep.subr.mxu0 0.0
  %1663 = vmatpush1.msra.mxu0 0.0
  %1664 = vmatprep.subr.mxu0 0.0
  %1665 = vmatpush1.msra.mxu0 0.0
  %1666 = vmatprep.subr.mxu0 0.0
  %1667 = vmatpush1.msra.mxu0 0.0
  %1668 = vmatprep.subr.mxu0 0.0
  %1669 = vmatpush1.msra.mxu0 0.0
  %1670 = vmatprep.subr.mxu0 0.0
  %1671 = vmatpush1.msra.mxu0 0.0
  %1672 = vmatprep.subr.mxu0 0.0
  %1673 = vmatpush1.msra.mxu0 0.0
  %1674 = vmatprep.subr.mxu0 0.0
  %1675 = vmatpush1.msra.mxu0 0.0
  %1676 = vmatprep.subr.mxu0 0.0
  %1677 = vmatpush1.msra.mxu0 0.0
  %1678 = vmatprep.mubr.f32.mxu0 0.0
  %v1679 = vand.u32 %v1294, 4294901760
  %1680 = vmatmul.mubr.f32.gmra.mrb[0].mxu0 %v1679
  %v1681 = vpop.f32.mrb[0].mxu0
  %v1682 = vadd.f32 %v1421, %v1681
  %v1683 = vpop.f32.mrb[0].mxu0
  %1684 = vmatprep.mubr.f32.mxu0 0.0
  %v1685 = vand.u32 %v1297, 4294901760
  %1686 = vmatmul.mubr.f32.gmra.mrb[0].mxu0 %v1685
  %v1687 = vpop.f32.mrb[0].mxu0
  %v1688 = vadd.f32 %v1431, %v1687
  %v1689 = vpop.f32.mrb[0].mxu0
  %1690 = vmatprep.mubr.f32.mxu0 0.0
  %v1691 = vand.u32 %v1300, 4294901760
  %1692 = vmatmul.mubr.f32.gmra.mrb[0].mxu0 %v1691
  %v1693 = vpop.f32.mrb[0].mxu0
  %v1694 = vadd.f32 %v1441, %v1693
  %v1695 = vpop.f32.mrb[0].mxu0
  %1696 = vmatprep.mubr.f32.mxu0 0.0
  %v1697 = vand.u32 %v1303, 4294901760
  %1698 = vmatmul.mubr.f32.gmra.mrb[0].mxu0 %v1697
  %v1699 = vpop.f32.mrb[0].mxu0
  %v1700 = vadd.f32 %v1451, %v1699
  %v1701 = vpop.f32.mrb[0].mxu0
  %1702 = vmatprep.mubr.f32.mxu0 0.0
  %v1703 = vand.u32 %v1306, 4294901760
  %1704 = vmatmul.mubr.f32.gmra.mrb[0].mxu0 %v1703
  %v1705 = vpop.f32.mrb[0].mxu0
  %v1706 = vadd.f32 %v1461, %v1705
  %v1707 = vpop.f32.mrb[0].mxu0
  %1708 = vmatprep.mubr.f32.mxu0 0.0
  %v1709 = vand.u32 %v1309, 4294901760
  %1710 = vmatmul.mubr.f32.gmra.mrb[0].mxu0 %v1709
  %v1711 = vpop.f32.mrb[0].mxu0
  %v1712 = vadd.f32 %v1471, %v1711
  %v1713 = vpop.f32.mrb[0].mxu0
  %1714 = vmatprep.mubr.f32.mxu0 0.0
  %v1715 = vand.u32 %v1312, 4294901760
  %1716 = vmatmul.mubr.f32.gmra.mrb[0].mxu0 %v1715
  %v1717 = vpop.f32.mrb[0].mxu0
  %v1718 = vadd.f32 %v1481, %v1717
  %v1719 = vpop.f32.mrb[0].mxu0
  %1720 = vmatprep.mubr.f32.mxu0 0.0
  %v1721 = vand.u32 %v1315, 4294901760
  %1722 = vmatmul.mubr.f32.gmra.mrb[0].mxu0 %v1721
  %v1723 = vpop.f32.mrb[0].mxu0
  %v1724 = vadd.f32 %v1491, %v1723
  %v1725 = vpop.f32.mrb[0].mxu0
  %1726 = vmatprep.mubr.f32.mxu0 0.0
  %v1727 = vand.u32 %v1318, 4294901760
  %1728 = vmatmul.mubr.f32.gmra.mrb[0].mxu0 %v1727
  %v1729 = vpop.f32.mrb[0].mxu0
  %v1730 = vadd.f32 %v1501, %v1729
  %v1731 = vpop.f32.mrb[0].mxu0
  %1732 = vmatprep.mubr.f32.mxu0 0.0
  %v1733 = vand.u32 %v1321, 4294901760
  %1734 = vmatmul.mubr.f32.gmra.mrb[0].mxu0 %v1733
  %v1735 = vpop.f32.mrb[0].mxu0
  %v1736 = vadd.f32 %v1511, %v1735
  %v1737 = vpop.f32.mrb[0].mxu0
  %1738 = vmatprep.mubr.f32.mxu0 0.0
  %v1739 = vand.u32 %v1324, 4294901760
  %1740 = vmatmul.mubr.f32.gmra.mrb[0].mxu0 %v1739
  %v1741 = vpop.f32.mrb[0].mxu0
  %v1742 = vadd.f32 %v1521, %v1741
  %v1743 = vpop.f32.mrb[0].mxu0
  %1744 = vmatprep.mubr.f32.mxu0 0.0
  %v1745 = vand.u32 %v1327, 4294901760
  %1746 = vmatmul.mubr.f32.gmra.mrb[0].mxu0 %v1745
  %v1747 = vpop.f32.mrb[0].mxu0
  %v1748 = vadd.f32 %v1531, %v1747
  %v1749 = vpop.f32.mrb[0].mxu0
  %1750 = vmatprep.mubr.f32.mxu0 0.0
  %v1751 = vand.u32 %v1330, 4294901760
  %1752 = vmatmul.mubr.f32.gmra.mrb[0].mxu0 %v1751
  %v1753 = vpop.f32.mrb[0].mxu0
  %v1754 = vadd.f32 %v1541, %v1753
  %v1755 = vpop.f32.mrb[0].mxu0
  %1756 = vmatprep.mubr.f32.mxu0 0.0
  %v1757 = vand.u32 %v1333, 4294901760
  %1758 = vmatmul.mubr.f32.gmra.mrb[0].mxu0 %v1757
  %v1759 = vpop.f32.mrb[0].mxu0
  %v1760 = vadd.f32 %v1551, %v1759
  %v1761 = vpop.f32.mrb[0].mxu0
  %1762 = vmatprep.mubr.f32.mxu0 0.0
  %v1763 = vand.u32 %v1336, 4294901760
  %1764 = vmatmul.mubr.f32.gmra.mrb[0].mxu0 %v1763
  %v1765 = vpop.f32.mrb[0].mxu0
  %v1766 = vadd.f32 %v1561, %v1765
  %v1767 = vpop.f32.mrb[0].mxu0
  %1768 = vmatprep.mubr.f32.mxu0 0.0
  %v1769 = vand.u32 %v1339, 4294901760
  %1770 = vmatmul.mubr.f32.gmra.mrb[0].mxu0 %v1769
  %v1771 = vpop.f32.mrb[0].mxu0
  %v1772 = vadd.f32 %v1571, %v1771
  %v1773 = vpop.f32.mrb[0].mxu0
  %1774 = vdwg.mxu0
  %1775 = vmatprep.subr.mxu0 0.0
  %v1776 = vand.u32 %v1285, 4294901760
  %v1777 = vsub.f32 %v1285, %v1776
  %1778 = vmatpush1.msra.mxu0 %v1777
  %1779 = vmatprep.subr.mxu0 0.0
  %v1780 = vand.u32 %v1286, 4294901760
  %v1781 = vsub.f32 %v1286, %v1780
  %1782 = vmatpush1.msra.mxu0 %v1781
  %1783 = vmatprep.subr.mxu0 0.0
  %v1784 = vand.u32 %v1287, 4294901760
  %v1785 = vsub.f32 %v1287, %v1784
  %1786 = vmatpush1.msra.mxu0 %v1785
  %1787 = vmatprep.subr.mxu0 0.0
  %v1788 = vand.u32 %v1288, 4294901760
  %v1789 = vsub.f32 %v1288, %v1788
  %1790 = vmatpush1.msra.mxu0 %v1789
  %1791 = vmatprep.subr.mxu0 0.0
  %v1792 = vand.u32 %v1289, 4294901760
  %v1793 = vsub.f32 %v1289, %v1792
  %1794 = vmatpush1.msra.mxu0 %v1793
  %1795 = vmatprep.subr.mxu0 0.0
  %v1796 = vand.u32 %v1290, 4294901760
  %v1797 = vsub.f32 %v1290, %v1796
  %1798 = vmatpush1.msra.mxu0 %v1797
  %1799 = vmatprep.subr.mxu0 0.0
  %v1800 = vand.u32 %v1291, 4294901760
  %v1801 = vsub.f32 %v1291, %v1800
  %1802 = vmatpush1.msra.mxu0 %v1801
  %1803 = vmatprep.subr.mxu0 0.0
  %v1804 = vand.u32 %v1292, 4294901760
  %v1805 = vsub.f32 %v1292, %v1804
  %1806 = vmatpush1.msra.mxu0 %v1805
  %1807 = vmatprep.subr.mxu0 0.0
  %1808 = vmatpush1.msra.mxu0 0.0
  %1809 = vmatprep.subr.mxu0 0.0
  %1810 = vmatpush1.msra.mxu0 0.0
  %1811 = vmatprep.subr.mxu0 0.0
  %1812 = vmatpush1.msra.mxu0 0.0
  %1813 = vmatprep.subr.mxu0 0.0
  %1814 = vmatpush1.msra.mxu0 0.0
  %1815 = vmatprep.subr.mxu0 0.0
  %1816 = vmatpush1.msra.mxu0 0.0
  %1817 = vmatprep.subr.mxu0 0.0
  %1818 = vmatpush1.msra.mxu0 0.0
  %1819 = vmatprep.subr.mxu0 0.0
  %1820 = vmatpush1.msra.mxu0 0.0
  %1821 = vmatprep.subr.mxu0 0.0
  %1822 = vmatpush1.msra.mxu0 0.0
  %1823 = vmatprep.subr.mxu0 0.0
  %1824 = vmatpush1.msra.mxu0 0.0
  %1825 = vmatprep.subr.mxu0 0.0
  %1826 = vmatpush1.msra.mxu0 0.0
  %1827 = vmatprep.subr.mxu0 0.0
  %1828 = vmatpush1.msra.mxu0 0.0
  %1829 = vmatprep.subr.mxu0 0.0
  %1830 = vmatpush1.msra.mxu0 0.0
  %1831 = vmatprep.subr.mxu0 0.0
  %1832 = vmatpush1.msra.mxu0 0.0
  %1833 = vmatprep.subr.mxu0 0.0
  %1834 = vmatpush1.msra.mxu0 0.0
  %1835 = vmatprep.subr.mxu0 0.0
  %1836 = vmatpush1.msra.mxu0 0.0
  %1837 = vmatprep.subr.mxu0 0.0
  %1838 = vmatpush1.msra.mxu0 0.0
  %1839 = vmatprep.subr.mxu0 0.0
  %1840 = vmatpush1.msra.mxu0 0.0
  %1841 = vmatprep.subr.mxu0 0.0
  %1842 = vmatpush1.msra.mxu0 0.0
  %1843 = vmatprep.subr.mxu0 0.0
  %1844 = vmatpush1.msra.mxu0 0.0
  %1845 = vmatprep.subr.mxu0 0.0
  %1846 = vmatpush1.msra.mxu0 0.0
  %1847 = vmatprep.subr.mxu0 0.0
  %1848 = vmatpush1.msra.mxu0 0.0
  %1849 = vmatprep.subr.mxu0 0.0
  %1850 = vmatpush1.msra.mxu0 0.0
  %1851 = vmatprep.subr.mxu0 0.0
  %1852 = vmatpush1.msra.mxu0 0.0
  %1853 = vmatprep.subr.mxu0 0.0
  %1854 = vmatpush1.msra.mxu0 0.0
  %1855 = vmatprep.mubr.f32.mxu0 0.0
  %v1856 = vand.u32 %v1294, 4294901760
  %v1857 = vsub.f32 %v1294, %v1856
  %1858 = vmatmul.mubr.f32.gmra.mrb[0].mxu0 %v1857
  %v1859 = vpop.f32.mrb[0].mxu0
  %v1860 = vadd.f32 %v1682, %v1859
  %v1861 = vpop.f32.mrb[0].mxu0
  %1862 = vmatprep.mubr.f32.mxu0 0.0
  %v1863 = vand.u32 %v1297, 4294901760
  %v1864 = vsub.f32 %v1297, %v1863
  %1865 = vmatmul.mubr.f32.gmra.mrb[0].mxu0 %v1864
  %v1866 = vpop.f32.mrb[0].mxu0
  %v1867 = vadd.f32 %v1688, %v1866
  %v1868 = vpop.f32.mrb[0].mxu0
  %1869 = vmatprep.mubr.f32.mxu0 0.0
  %v1870 = vand.u32 %v1300, 4294901760
  %v1871 = vsub.f32 %v1300, %v1870
  %1872 = vmatmul.mubr.f32.gmra.mrb[0].mxu0 %v1871
  %v1873 = vpop.f32.mrb[0].mxu0
  %v1874 = vadd.f32 %v1694, %v1873
  %v1875 = vpop.f32.mrb[0].mxu0
  %1876 = vmatprep.mubr.f32.mxu0 0.0
  %v1877 = vand.u32 %v1303, 4294901760
  %v1878 = vsub.f32 %v1303, %v1877
  %1879 = vmatmul.mubr.f32.gmra.mrb[0].mxu0 %v1878
  %v1880 = vpop.f32.mrb[0].mxu0
  %v1881 = vadd.f32 %v1700, %v1880
  %v1882 = vpop.f32.mrb[0].mxu0
  %1883 = vmatprep.mubr.f32.mxu0 0.0
  %v1884 = vand.u32 %v1306, 4294901760
  %v1885 = vsub.f32 %v1306, %v1884
  %1886 = vmatmul.mubr.f32.gmra.mrb[0].mxu0 %v1885
  %v1887 = vpop.f32.mrb[0].mxu0
  %v1888 = vadd.f32 %v1706, %v1887
  %v1889 = vpop.f32.mrb[0].mxu0
  %1890 = vmatprep.mubr.f32.mxu0 0.0
  %v1891 = vand.u32 %v1309, 4294901760
  %v1892 = vsub.f32 %v1309, %v1891
  %1893 = vmatmul.mubr.f32.gmra.mrb[0].mxu0 %v1892
  %v1894 = vpop.f32.mrb[0].mxu0
  %v1895 = vadd.f32 %v1712, %v1894
  %v1896 = vpop.f32.mrb[0].mxu0
  %1897 = vmatprep.mubr.f32.mxu0 0.0
  %v1898 = vand.u32 %v1312, 4294901760
  %v1899 = vsub.f32 %v1312, %v1898
  %1900 = vmatmul.mubr.f32.gmra.mrb[0].mxu0 %v1899
  %v1901 = vpop.f32.mrb[0].mxu0
  %v1902 = vadd.f32 %v1718, %v1901
  %v1903 = vpop.f32.mrb[0].mxu0
  %1904 = vmatprep.mubr.f32.mxu0 0.0
  %v1905 = vand.u32 %v1315, 4294901760
  %v1906 = vsub.f32 %v1315, %v1905
  %1907 = vmatmul.mubr.f32.gmra.mrb[0].mxu0 %v1906
  %v1908 = vpop.f32.mrb[0].mxu0
  %v1909 = vadd.f32 %v1724, %v1908
  %v1910 = vpop.f32.mrb[0].mxu0
  %1911 = vmatprep.mubr.f32.mxu0 0.0
  %v1912 = vand.u32 %v1318, 4294901760
  %v1913 = vsub.f32 %v1318, %v1912
  %1914 = vmatmul.mubr.f32.gmra.mrb[0].mxu0 %v1913
  %v1915 = vpop.f32.mrb[0].mxu0
  %v1916 = vadd.f32 %v1730, %v1915
  %v1917 = vpop.f32.mrb[0].mxu0
  %1918 = vmatprep.mubr.f32.mxu0 0.0
  %v1919 = vand.u32 %v1321, 4294901760
  %v1920 = vsub.f32 %v1321, %v1919
  %1921 = vmatmul.mubr.f32.gmra.mrb[0].mxu0 %v1920
  %v1922 = vpop.f32.mrb[0].mxu0
  %v1923 = vadd.f32 %v1736, %v1922
  %v1924 = vpop.f32.mrb[0].mxu0
  %1925 = vmatprep.mubr.f32.mxu0 0.0
  %v1926 = vand.u32 %v1324, 4294901760
  %v1927 = vsub.f32 %v1324, %v1926
  %1928 = vmatmul.mubr.f32.gmra.mrb[0].mxu0 %v1927
  %v1929 = vpop.f32.mrb[0].mxu0
  %v1930 = vadd.f32 %v1742, %v1929
  %v1931 = vpop.f32.mrb[0].mxu0
  %1932 = vmatprep.mubr.f32.mxu0 0.0
  %v1933 = vand.u32 %v1327, 4294901760
  %v1934 = vsub.f32 %v1327, %v1933
  %1935 = vmatmul.mubr.f32.gmra.mrb[0].mxu0 %v1934
  %v1936 = vpop.f32.mrb[0].mxu0
  %v1937 = vadd.f32 %v1748, %v1936
  %v1938 = vpop.f32.mrb[0].mxu0
  %1939 = vmatprep.mubr.f32.mxu0 0.0
  %v1940 = vand.u32 %v1330, 4294901760
  %v1941 = vsub.f32 %v1330, %v1940
  %1942 = vmatmul.mubr.f32.gmra.mrb[0].mxu0 %v1941
  %v1943 = vpop.f32.mrb[0].mxu0
  %v1944 = vadd.f32 %v1754, %v1943
  %v1945 = vpop.f32.mrb[0].mxu0
  %1946 = vmatprep.mubr.f32.mxu0 0.0
  %v1947 = vand.u32 %v1333, 4294901760
  %v1948 = vsub.f32 %v1333, %v1947
  %1949 = vmatmul.mubr.f32.gmra.mrb[0].mxu0 %v1948
  %v1950 = vpop.f32.mrb[0].mxu0
  %v1951 = vadd.f32 %v1760, %v1950
  %v1952 = vpop.f32.mrb[0].mxu0
  %1953 = vmatprep.mubr.f32.mxu0 0.0
  %v1954 = vand.u32 %v1336, 4294901760
  %v1955 = vsub.f32 %v1336, %v1954
  %1956 = vmatmul.mubr.f32.gmra.mrb[0].mxu0 %v1955
  %v1957 = vpop.f32.mrb[0].mxu0
  %v1958 = vadd.f32 %v1766, %v1957
  %v1959 = vpop.f32.mrb[0].mxu0
  %1960 = vmatprep.mubr.f32.mxu0 0.0
  %v1961 = vand.u32 %v1339, 4294901760
  %v1962 = vsub.f32 %v1339, %v1961
  %1963 = vmatmul.mubr.f32.gmra.mrb[0].mxu0 %v1962
  %v1964 = vpop.f32.mrb[0].mxu0
  %v1965 = vadd.f32 %v1772, %v1964
  %v1966 = vpop.f32.mrb[0].mxu0
  %1967 = vdwg.mxu0
  %1968 = vmatprep.subr.mxu0 0.0
  %v1969 = vand.u32 %v1285, 4294901760
  %1970 = vmatpush1.msra.mxu0 %v1969
  %1971 = vmatprep.subr.mxu0 0.0
  %v1972 = vand.u32 %v1286, 4294901760
  %1973 = vmatpush1.msra.mxu0 %v1972
  %1974 = vmatprep.subr.mxu0 0.0
  %v1975 = vand.u32 %v1287, 4294901760
  %1976 = vmatpush1.msra.mxu0 %v1975
  %1977 = vmatprep.subr.mxu0 0.0
  %v1978 = vand.u32 %v1288, 4294901760
  %1979 = vmatpush1.msra.mxu0 %v1978
  %1980 = vmatprep.subr.mxu0 0.0
  %v1981 = vand.u32 %v1289, 4294901760
  %1982 = vmatpush1.msra.mxu0 %v1981
  %1983 = vmatprep.subr.mxu0 0.0
  %v1984 = vand.u32 %v1290, 4294901760
  %1985 = vmatpush1.msra.mxu0 %v1984
  %1986 = vmatprep.subr.mxu0 0.0
  %v1987 = vand.u32 %v1291, 4294901760
  %1988 = vmatpush1.msra.mxu0 %v1987
  %1989 = vmatprep.subr.mxu0 0.0
  %v1990 = vand.u32 %v1292, 4294901760
  %1991 = vmatpush1.msra.mxu0 %v1990
  %1992 = vmatprep.subr.mxu0 0.0
  %1993 = vmatpush1.msra.mxu0 0.0
  %1994 = vmatprep.subr.mxu0 0.0
  %1995 = vmatpush1.msra.mxu0 0.0
  %1996 = vmatprep.subr.mxu0 0.0
  %1997 = vmatpush1.msra.mxu0 0.0
  %1998 = vmatprep.subr.mxu0 0.0
  %1999 = vmatpush1.msra.mxu0 0.0
  %2000 = vmatprep.subr.mxu0 0.0
  %2001 = vmatpush1.msra.mxu0 0.0
  %2002 = vmatprep.subr.mxu0 0.0
  %2003 = vmatpush1.msra.mxu0 0.0
  %2004 = vmatprep.subr.mxu0 0.0
  %2005 = vmatpush1.msra.mxu0 0.0
  %2006 = vmatprep.subr.mxu0 0.0
  %2007 = vmatpush1.msra.mxu0 0.0
  %2008 = vmatprep.subr.mxu0 0.0
  %2009 = vmatpush1.msra.mxu0 0.0
  %2010 = vmatprep.subr.mxu0 0.0
  %2011 = vmatpush1.msra.mxu0 0.0
  %2012 = vmatprep.subr.mxu0 0.0
  %2013 = vmatpush1.msra.mxu0 0.0
  %2014 = vmatprep.subr.mxu0 0.0
  %2015 = vmatpush1.msra.mxu0 0.0
  %2016 = vmatprep.subr.mxu0 0.0
  %2017 = vmatpush1.msra.mxu0 0.0
  %2018 = vmatprep.subr.mxu0 0.0
  %2019 = vmatpush1.msra.mxu0 0.0
  %2020 = vmatprep.subr.mxu0 0.0
  %2021 = vmatpush1.msra.mxu0 0.0
  %2022 = vmatprep.subr.mxu0 0.0
  %2023 = vmatpush1.msra.mxu0 0.0
  %2024 = vmatprep.subr.mxu0 0.0
  %2025 = vmatpush1.msra.mxu0 0.0
  %2026 = vmatprep.subr.mxu0 0.0
  %2027 = vmatpush1.msra.mxu0 0.0
  %2028 = vmatprep.subr.mxu0 0.0
  %2029 = vmatpush1.msra.mxu0 0.0
  %2030 = vmatprep.subr.mxu0 0.0
  %2031 = vmatpush1.msra.mxu0 0.0
  %2032 = vmatprep.subr.mxu0 0.0
  %2033 = vmatpush1.msra.mxu0 0.0
  %2034 = vmatprep.subr.mxu0 0.0
  %2035 = vmatpush1.msra.mxu0 0.0
  %2036 = vmatprep.subr.mxu0 0.0
  %2037 = vmatpush1.msra.mxu0 0.0
  %2038 = vmatprep.subr.mxu0 0.0
  %2039 = vmatpush1.msra.mxu0 0.0
  %2040 = vmatprep.mubr.f32.mxu0 0.0
  %v2041 = vand.u32 %v1294, 4294901760
  %v2042 = vsub.f32 %v1294, %v2041
  %v2043 = vand.u32 %v2042, 4294901760
  %2044 = vmatmul.mubr.f32.gmra.mrb[0].mxu0 %v2043
  %v2045 = vpop.f32.mrb[0].mxu0
  %v2046 = vadd.f32 %v1860, %v2045
  %v2047 = vpop.f32.mrb[0].mxu0
  %2048 = vmatprep.mubr.f32.mxu0 0.0
  %v2049 = vand.u32 %v1297, 4294901760
  %v2050 = vsub.f32 %v1297, %v2049
  %v2051 = vand.u32 %v2050, 4294901760
  %2052 = vmatmul.mubr.f32.gmra.mrb[0].mxu0 %v2051
  %v2053 = vpop.f32.mrb[0].mxu0
  %v2054 = vadd.f32 %v1867, %v2053
  %v2055 = vpop.f32.mrb[0].mxu0
  %2056 = vmatprep.mubr.f32.mxu0 0.0
  %v2057 = vand.u32 %v1300, 4294901760
  %v2058 = vsub.f32 %v1300, %v2057
  %v2059 = vand.u32 %v2058, 4294901760
  %2060 = vmatmul.mubr.f32.gmra.mrb[0].mxu0 %v2059
  %v2061 = vpop.f32.mrb[0].mxu0
  %v2062 = vadd.f32 %v1874, %v2061
  %v2063 = vpop.f32.mrb[0].mxu0
  %2064 = vmatprep.mubr.f32.mxu0 0.0
  %v2065 = vand.u32 %v1303, 4294901760
  %v2066 = vsub.f32 %v1303, %v2065
  %v2067 = vand.u32 %v2066, 4294901760
  %2068 = vmatmul.mubr.f32.gmra.mrb[0].mxu0 %v2067
  %v2069 = vpop.f32.mrb[0].mxu0
  %v2070 = vadd.f32 %v1881, %v2069
  %v2071 = vpop.f32.mrb[0].mxu0
  %2072 = vmatprep.mubr.f32.mxu0 0.0
  %v2073 = vand.u32 %v1306, 4294901760
  %v2074 = vsub.f32 %v1306, %v2073
  %v2075 = vand.u32 %v2074, 4294901760
  %2076 = vmatmul.mubr.f32.gmra.mrb[0].mxu0 %v2075
  %v2077 = vpop.f32.mrb[0].mxu0
  %v2078 = vadd.f32 %v1888, %v2077
  %v2079 = vpop.f32.mrb[0].mxu0
  %2080 = vmatprep.mubr.f32.mxu0 0.0
  %v2081 = vand.u32 %v1309, 4294901760
  %v2082 = vsub.f32 %v1309, %v2081
  %v2083 = vand.u32 %v2082, 4294901760
  %2084 = vmatmul.mubr.f32.gmra.mrb[0].mxu0 %v2083
  %v2085 = vpop.f32.mrb[0].mxu0
  %v2086 = vadd.f32 %v1895, %v2085
  %v2087 = vpop.f32.mrb[0].mxu0
  %2088 = vmatprep.mubr.f32.mxu0 0.0
  %v2089 = vand.u32 %v1312, 4294901760
  %v2090 = vsub.f32 %v1312, %v2089
  %v2091 = vand.u32 %v2090, 4294901760
  %2092 = vmatmul.mubr.f32.gmra.mrb[0].mxu0 %v2091
  %v2093 = vpop.f32.mrb[0].mxu0
  %v2094 = vadd.f32 %v1902, %v2093
  %v2095 = vpop.f32.mrb[0].mxu0
  %2096 = vmatprep.mubr.f32.mxu0 0.0
  %v2097 = vand.u32 %v1315, 4294901760
  %v2098 = vsub.f32 %v1315, %v2097
  %v2099 = vand.u32 %v2098, 4294901760
  %2100 = vmatmul.mubr.f32.gmra.mrb[0].mxu0 %v2099
  %v2101 = vpop.f32.mrb[0].mxu0
  %v2102 = vadd.f32 %v1909, %v2101
  %v2103 = vpop.f32.mrb[0].mxu0
  %2104 = vmatprep.mubr.f32.mxu0 0.0
  %v2105 = vand.u32 %v1318, 4294901760
  %v2106 = vsub.f32 %v1318, %v2105
  %v2107 = vand.u32 %v2106, 4294901760
  %2108 = vmatmul.mubr.f32.gmra.mrb[0].mxu0 %v2107
  %v2109 = vpop.f32.mrb[0].mxu0
  %v2110 = vadd.f32 %v1916, %v2109
  %v2111 = vpop.f32.mrb[0].mxu0
  %2112 = vmatprep.mubr.f32.mxu0 0.0
  %v2113 = vand.u32 %v1321, 4294901760
  %v2114 = vsub.f32 %v1321, %v2113
  %v2115 = vand.u32 %v2114, 4294901760
  %2116 = vmatmul.mubr.f32.gmra.mrb[0].mxu0 %v2115
  %v2117 = vpop.f32.mrb[0].mxu0
  %v2118 = vadd.f32 %v1923, %v2117
  %v2119 = vpop.f32.mrb[0].mxu0
  %2120 = vmatprep.mubr.f32.mxu0 0.0
  %v2121 = vand.u32 %v1324, 4294901760
  %v2122 = vsub.f32 %v1324, %v2121
  %v2123 = vand.u32 %v2122, 4294901760
  %2124 = vmatmul.mubr.f32.gmra.mrb[0].mxu0 %v2123
  %v2125 = vpop.f32.mrb[0].mxu0
  %v2126 = vadd.f32 %v1930, %v2125
  %v2127 = vpop.f32.mrb[0].mxu0
  %2128 = vmatprep.mubr.f32.mxu0 0.0
  %v2129 = vand.u32 %v1327, 4294901760
  %v2130 = vsub.f32 %v1327, %v2129
  %v2131 = vand.u32 %v2130, 4294901760
  %2132 = vmatmul.mubr.f32.gmra.mrb[0].mxu0 %v2131
  %v2133 = vpop.f32.mrb[0].mxu0
  %v2134 = vadd.f32 %v1937, %v2133
  %v2135 = vpop.f32.mrb[0].mxu0
  %2136 = vmatprep.mubr.f32.mxu0 0.0
  %v2137 = vand.u32 %v1330, 4294901760
  %v2138 = vsub.f32 %v1330, %v2137
  %v2139 = vand.u32 %v2138, 4294901760
  %2140 = vmatmul.mubr.f32.gmra.mrb[0].mxu0 %v2139
  %v2141 = vpop.f32.mrb[0].mxu0
  %v2142 = vadd.f32 %v1944, %v2141
  %v2143 = vpop.f32.mrb[0].mxu0
  %2144 = vmatprep.mubr.f32.mxu0 0.0
  %v2145 = vand.u32 %v1333, 4294901760
  %v2146 = vsub.f32 %v1333, %v2145
  %v2147 = vand.u32 %v2146, 4294901760
  %2148 = vmatmul.mubr.f32.gmra.mrb[0].mxu0 %v2147
  %v2149 = vpop.f32.mrb[0].mxu0
  %v2150 = vadd.f32 %v1951, %v2149
  %v2151 = vpop.f32.mrb[0].mxu0
  %2152 = vmatprep.mubr.f32.mxu0 0.0
  %v2153 = vand.u32 %v1336, 4294901760
  %v2154 = vsub.f32 %v1336, %v2153
  %v2155 = vand.u32 %v2154, 4294901760
  %2156 = vmatmul.mubr.f32.gmra.mrb[0].mxu0 %v2155
  %v2157 = vpop.f32.mrb[0].mxu0
  %v2158 = vadd.f32 %v1958, %v2157
  %v2159 = vpop.f32.mrb[0].mxu0
  %2160 = vmatprep.mubr.f32.mxu0 0.0
  %v2161 = vand.u32 %v1339, 4294901760
  %v2162 = vsub.f32 %v1339, %v2161
  %v2163 = vand.u32 %v2162, 4294901760
  %2164 = vmatmul.mubr.f32.gmra.mrb[0].mxu0 %v2163
  %v2165 = vpop.f32.mrb[0].mxu0
  %v2166 = vadd.f32 %v1965, %v2165
  %v2167 = vpop.f32.mrb[0].mxu0
  %2168 = vdwg.mxu0
  %2169 = vmatprep.subr.mxu0 0.0
  %v2170 = vand.u32 %v1285, 4294901760
  %v2171 = vsub.f32 %v1285, %v2170
  %v2172 = vand.u32 %v2171, 4294901760
  %2173 = vmatpush1.msra.mxu0 %v2172
  %2174 = vmatprep.subr.mxu0 0.0
  %v2175 = vand.u32 %v1286, 4294901760
  %v2176 = vsub.f32 %v1286, %v2175
  %v2177 = vand.u32 %v2176, 4294901760
  %2178 = vmatpush1.msra.mxu0 %v2177
  %2179 = vmatprep.subr.mxu0 0.0
  %v2180 = vand.u32 %v1287, 4294901760
  %v2181 = vsub.f32 %v1287, %v2180
  %v2182 = vand.u32 %v2181, 4294901760
  %2183 = vmatpush1.msra.mxu0 %v2182
  %2184 = vmatprep.subr.mxu0 0.0
  %v2185 = vand.u32 %v1288, 4294901760
  %v2186 = vsub.f32 %v1288, %v2185
  %v2187 = vand.u32 %v2186, 4294901760
  %2188 = vmatpush1.msra.mxu0 %v2187
  %2189 = vmatprep.subr.mxu0 0.0
  %v2190 = vand.u32 %v1289, 4294901760
  %v2191 = vsub.f32 %v1289, %v2190
  %v2192 = vand.u32 %v2191, 4294901760
  %2193 = vmatpush1.msra.mxu0 %v2192
  %2194 = vmatprep.subr.mxu0 0.0
  %v2195 = vand.u32 %v1290, 4294901760
  %v2196 = vsub.f32 %v1290, %v2195
  %v2197 = vand.u32 %v2196, 4294901760
  %2198 = vmatpush1.msra.mxu0 %v2197
  %2199 = vmatprep.subr.mxu0 0.0
  %v2200 = vand.u32 %v1291, 4294901760
  %v2201 = vsub.f32 %v1291, %v2200
  %v2202 = vand.u32 %v2201, 4294901760
  %2203 = vmatpush1.msra.mxu0 %v2202
  %2204 = vmatprep.subr.mxu0 0.0
  %v2205 = vand.u32 %v1292, 4294901760
  %v2206 = vsub.f32 %v1292, %v2205
  %v2207 = vand.u32 %v2206, 4294901760
  %2208 = vmatpush1.msra.mxu0 %v2207
  %2209 = vmatprep.subr.mxu0 0.0
  %2210 = vmatpush1.msra.mxu0 0.0
  %2211 = vmatprep.subr.mxu0 0.0
  %2212 = vmatpush1.msra.mxu0 0.0
  %2213 = vmatprep.subr.mxu0 0.0
  %2214 = vmatpush1.msra.mxu0 0.0
  %2215 = vmatprep.subr.mxu0 0.0
  %2216 = vmatpush1.msra.mxu0 0.0
  %2217 = vmatprep.subr.mxu0 0.0
  %2218 = vmatpush1.msra.mxu0 0.0
  %2219 = vmatprep.subr.mxu0 0.0
  %2220 = vmatpush1.msra.mxu0 0.0
  %2221 = vmatprep.subr.mxu0 0.0
  %2222 = vmatpush1.msra.mxu0 0.0
  %2223 = vmatprep.subr.mxu0 0.0
  %2224 = vmatpush1.msra.mxu0 0.0
  %2225 = vmatprep.subr.mxu0 0.0
  %2226 = vmatpush1.msra.mxu0 0.0
  %2227 = vmatprep.subr.mxu0 0.0
  %2228 = vmatpush1.msra.mxu0 0.0
  %2229 = vmatprep.subr.mxu0 0.0
  %2230 = vmatpush1.msra.mxu0 0.0
  %2231 = vmatprep.subr.mxu0 0.0
  %2232 = vmatpush1.msra.mxu0 0.0
  %2233 = vmatprep.subr.mxu0 0.0
  %2234 = vmatpush1.msra.mxu0 0.0
  %2235 = vmatprep.subr.mxu0 0.0
  %2236 = vmatpush1.msra.mxu0 0.0
  %2237 = vmatprep.subr.mxu0 0.0
  %2238 = vmatpush1.msra.mxu0 0.0
  %2239 = vmatprep.subr.mxu0 0.0
  %2240 = vmatpush1.msra.mxu0 0.0
  %2241 = vmatprep.subr.mxu0 0.0
  %2242 = vmatpush1.msra.mxu0 0.0
  %2243 = vmatprep.subr.mxu0 0.0
  %2244 = vmatpush1.msra.mxu0 0.0
  %2245 = vmatprep.subr.mxu0 0.0
  %2246 = vmatpush1.msra.mxu0 0.0
  %2247 = vmatprep.subr.mxu0 0.0
  %2248 = vmatpush1.msra.mxu0 0.0
  %2249 = vmatprep.subr.mxu0 0.0
  %2250 = vmatpush1.msra.mxu0 0.0
  %2251 = vmatprep.subr.mxu0 0.0
  %2252 = vmatpush1.msra.mxu0 0.0
  %2253 = vmatprep.subr.mxu0 0.0
  %2254 = vmatpush1.msra.mxu0 0.0
  %2255 = vmatprep.subr.mxu0 0.0
  %2256 = vmatpush1.msra.mxu0 0.0
  %2257 = vmatprep.mubr.f32.mxu0 0.0
  %v2258 = vand.u32 %v1294, 4294901760
  %2259 = vmatmul.mubr.f32.gmra.mrb[0].mxu0 %v2258
  %v2260 = vpop.f32.mrb[0].mxu0
  %v2261 = vadd.f32 %v2046, %v2260
  %v2262 = vpop.f32.mrb[0].mxu0
  %2263 = vmatprep.mubr.f32.mxu0 0.0
  %v2264 = vand.u32 %v1297, 4294901760
  %2265 = vmatmul.mubr.f32.gmra.mrb[0].mxu0 %v2264
  %v2266 = vpop.f32.mrb[0].mxu0
  %v2267 = vadd.f32 %v2054, %v2266
  %v2268 = vpop.f32.mrb[0].mxu0
  %2269 = vmatprep.mubr.f32.mxu0 0.0
  %v2270 = vand.u32 %v1300, 4294901760
  %2271 = vmatmul.mubr.f32.gmra.mrb[0].mxu0 %v2270
  %v2272 = vpop.f32.mrb[0].mxu0
  %v2273 = vadd.f32 %v2062, %v2272
  %v2274 = vpop.f32.mrb[0].mxu0
  %2275 = vmatprep.mubr.f32.mxu0 0.0
  %v2276 = vand.u32 %v1303, 4294901760
  %2277 = vmatmul.mubr.f32.gmra.mrb[0].mxu0 %v2276
  %v2278 = vpop.f32.mrb[0].mxu0
  %v2279 = vadd.f32 %v2070, %v2278
  %v2280 = vpop.f32.mrb[0].mxu0
  %2281 = vmatprep.mubr.f32.mxu0 0.0
  %v2282 = vand.u32 %v1306, 4294901760
  %2283 = vmatmul.mubr.f32.gmra.mrb[0].mxu0 %v2282
  %v2284 = vpop.f32.mrb[0].mxu0
  %v2285 = vadd.f32 %v2078, %v2284
  %v2286 = vpop.f32.mrb[0].mxu0
  %2287 = vmatprep.mubr.f32.mxu0 0.0
  %v2288 = vand.u32 %v1309, 4294901760
  %2289 = vmatmul.mubr.f32.gmra.mrb[0].mxu0 %v2288
  %v2290 = vpop.f32.mrb[0].mxu0
  %v2291 = vadd.f32 %v2086, %v2290
  %v2292 = vpop.f32.mrb[0].mxu0
  %2293 = vmatprep.mubr.f32.mxu0 0.0
  %v2294 = vand.u32 %v1312, 4294901760
  %2295 = vmatmul.mubr.f32.gmra.mrb[0].mxu0 %v2294
  %v2296 = vpop.f32.mrb[0].mxu0
  %v2297 = vadd.f32 %v2094, %v2296
  %v2298 = vpop.f32.mrb[0].mxu0
  %2299 = vmatprep.mubr.f32.mxu0 0.0
  %v2300 = vand.u32 %v1315, 4294901760
  %2301 = vmatmul.mubr.f32.gmra.mrb[0].mxu0 %v2300
  %v2302 = vpop.f32.mrb[0].mxu0
  %v2303 = vadd.f32 %v2102, %v2302
  %v2304 = vpop.f32.mrb[0].mxu0
  %2305 = vmatprep.mubr.f32.mxu0 0.0
  %v2306 = vand.u32 %v1318, 4294901760
  %2307 = vmatmul.mubr.f32.gmra.mrb[0].mxu0 %v2306
  %v2308 = vpop.f32.mrb[0].mxu0
  %v2309 = vadd.f32 %v2110, %v2308
  %v2310 = vpop.f32.mrb[0].mxu0
  %2311 = vmatprep.mubr.f32.mxu0 0.0
  %v2312 = vand.u32 %v1321, 4294901760
  %2313 = vmatmul.mubr.f32.gmra.mrb[0].mxu0 %v2312
  %v2314 = vpop.f32.mrb[0].mxu0
  %v2315 = vadd.f32 %v2118, %v2314
  %v2316 = vpop.f32.mrb[0].mxu0
  %2317 = vmatprep.mubr.f32.mxu0 0.0
  %v2318 = vand.u32 %v1324, 4294901760
  %2319 = vmatmul.mubr.f32.gmra.mrb[0].mxu0 %v2318
  %v2320 = vpop.f32.mrb[0].mxu0
  %v2321 = vadd.f32 %v2126, %v2320
  %v2322 = vpop.f32.mrb[0].mxu0
  %2323 = vmatprep.mubr.f32.mxu0 0.0
  %v2324 = vand.u32 %v1327, 4294901760
  %2325 = vmatmul.mubr.f32.gmra.mrb[0].mxu0 %v2324
  %v2326 = vpop.f32.mrb[0].mxu0
  %v2327 = vadd.f32 %v2134, %v2326
  %v2328 = vpop.f32.mrb[0].mxu0
  %2329 = vmatprep.mubr.f32.mxu0 0.0
  %v2330 = vand.u32 %v1330, 4294901760
  %2331 = vmatmul.mubr.f32.gmra.mrb[0].mxu0 %v2330
  %v2332 = vpop.f32.mrb[0].mxu0
  %v2333 = vadd.f32 %v2142, %v2332
  %v2334 = vpop.f32.mrb[0].mxu0
  %2335 = vmatprep.mubr.f32.mxu0 0.0
  %v2336 = vand.u32 %v1333, 4294901760
  %2337 = vmatmul.mubr.f32.gmra.mrb[0].mxu0 %v2336
  %v2338 = vpop.f32.mrb[0].mxu0
  %v2339 = vadd.f32 %v2150, %v2338
  %v2340 = vpop.f32.mrb[0].mxu0
  %2341 = vmatprep.mubr.f32.mxu0 0.0
  %v2342 = vand.u32 %v1336, 4294901760
  %2343 = vmatmul.mubr.f32.gmra.mrb[0].mxu0 %v2342
  %v2344 = vpop.f32.mrb[0].mxu0
  %v2345 = vadd.f32 %v2158, %v2344
  %v2346 = vpop.f32.mrb[0].mxu0
  %2347 = vmatprep.mubr.f32.mxu0 0.0
  %v2348 = vand.u32 %v1339, 4294901760
  %2349 = vmatmul.mubr.f32.gmra.mrb[0].mxu0 %v2348
  %v2350 = vpop.f32.mrb[0].mxu0
  %v2351 = vadd.f32 %v2166, %v2350
  %v2352 = vpop.f32.mrb[0].mxu0
  %2353 = vdwg.mxu0
  %2354 = vmatprep.subr.mxu0 0.0
  %v2355 = vand.u32 %v1285, 4294901760
  %2356 = vmatpush1.msra.mxu0 %v2355
  %2357 = vmatprep.subr.mxu0 0.0
  %v2358 = vand.u32 %v1286, 4294901760
  %2359 = vmatpush1.msra.mxu0 %v2358
  %2360 = vmatprep.subr.mxu0 0.0
  %v2361 = vand.u32 %v1287, 4294901760
  %2362 = vmatpush1.msra.mxu0 %v2361
  %2363 = vmatprep.subr.mxu0 0.0
  %v2364 = vand.u32 %v1288, 4294901760
  %2365 = vmatpush1.msra.mxu0 %v2364
  %2366 = vmatprep.subr.mxu0 0.0
  %v2367 = vand.u32 %v1289, 4294901760
  %2368 = vmatpush1.msra.mxu0 %v2367
  %2369 = vmatprep.subr.mxu0 0.0
  %v2370 = vand.u32 %v1290, 4294901760
  %2371 = vmatpush1.msra.mxu0 %v2370
  %2372 = vmatprep.subr.mxu0 0.0
  %v2373 = vand.u32 %v1291, 4294901760
  %2374 = vmatpush1.msra.mxu0 %v2373
  %2375 = vmatprep.subr.mxu0 0.0
  %v2376 = vand.u32 %v1292, 4294901760
  %2377 = vmatpush1.msra.mxu0 %v2376
  %2378 = vmatprep.subr.mxu0 0.0
  %2379 = vmatpush1.msra.mxu0 0.0
  %2380 = vmatprep.subr.mxu0 0.0
  %2381 = vmatpush1.msra.mxu0 0.0
  %2382 = vmatprep.subr.mxu0 0.0
  %2383 = vmatpush1.msra.mxu0 0.0
  %2384 = vmatprep.subr.mxu0 0.0
  %2385 = vmatpush1.msra.mxu0 0.0
  %2386 = vmatprep.subr.mxu0 0.0
  %2387 = vmatpush1.msra.mxu0 0.0
  %2388 = vmatprep.subr.mxu0 0.0
  %2389 = vmatpush1.msra.mxu0 0.0
  %2390 = vmatprep.subr.mxu0 0.0
  %2391 = vmatpush1.msra.mxu0 0.0
  %2392 = vmatprep.subr.mxu0 0.0
  %2393 = vmatpush1.msra.mxu0 0.0
  %2394 = vmatprep.subr.mxu0 0.0
  %2395 = vmatpush1.msra.mxu0 0.0
  %2396 = vmatprep.subr.mxu0 0.0
  %2397 = vmatpush1.msra.mxu0 0.0
  %2398 = vmatprep.subr.mxu0 0.0
  %2399 = vmatpush1.msra.mxu0 0.0
  %2400 = vmatprep.subr.mxu0 0.0
  %2401 = vmatpush1.msra.mxu0 0.0
  %2402 = vmatprep.subr.mxu0 0.0
  %2403 = vmatpush1.msra.mxu0 0.0
  %2404 = vmatprep.subr.mxu0 0.0
  %2405 = vmatpush1.msra.mxu0 0.0
  %2406 = vmatprep.subr.mxu0 0.0
  %2407 = vmatpush1.msra.mxu0 0.0
  %2408 = vmatprep.subr.mxu0 0.0
  %2409 = vmatpush1.msra.mxu0 0.0
  %2410 = vmatprep.subr.mxu0 0.0
  %2411 = vmatpush1.msra.mxu0 0.0
  %2412 = vmatprep.subr.mxu0 0.0
  %2413 = vmatpush1.msra.mxu0 0.0
  %2414 = vmatprep.subr.mxu0 0.0
  %2415 = vmatpush1.msra.mxu0 0.0
  %2416 = vmatprep.subr.mxu0 0.0
  %2417 = vmatpush1.msra.mxu0 0.0
  %2418 = vmatprep.subr.mxu0 0.0
  %2419 = vmatpush1.msra.mxu0 0.0
  %2420 = vmatprep.subr.mxu0 0.0
  %2421 = vmatpush1.msra.mxu0 0.0
  %2422 = vmatprep.subr.mxu0 0.0
  %2423 = vmatpush1.msra.mxu0 0.0
  %2424 = vmatprep.subr.mxu0 0.0
  %2425 = vmatpush1.msra.mxu0 0.0
  %2426 = vmatprep.mubr.f32.mxu0 0.0
  %v2427 = vand.u32 %v1294, 4294901760
  %2428 = vmatmul.mubr.f32.gmra.mrb[0].mxu0 %v2427
  %v2429 = vpop.f32.mrb[0].mxu0
  %v2430 = vadd.f32 %v2261, %v2429
  %v2431 = vpop.f32.mrb[0].mxu0
  %2432 = vmatprep.mubr.f32.mxu0 0.0
  %v2433 = vand.u32 %v1297, 4294901760
  %2434 = vmatmul.mubr.f32.gmra.mrb[0].mxu0 %v2433
  %v2435 = vpop.f32.mrb[0].mxu0
  %v2436 = vadd.f32 %v2267, %v2435
  %v2437 = vpop.f32.mrb[0].mxu0
  %2438 = vmatprep.mubr.f32.mxu0 0.0
  %v2439 = vand.u32 %v1300, 4294901760
  %2440 = vmatmul.mubr.f32.gmra.mrb[0].mxu0 %v2439
  %v2441 = vpop.f32.mrb[0].mxu0
  %v2442 = vadd.f32 %v2273, %v2441
  %v2443 = vpop.f32.mrb[0].mxu0
  %2444 = vmatprep.mubr.f32.mxu0 0.0
  %v2445 = vand.u32 %v1303, 4294901760
  %2446 = vmatmul.mubr.f32.gmra.mrb[0].mxu0 %v2445
  %v2447 = vpop.f32.mrb[0].mxu0
  %v2448 = vadd.f32 %v2279, %v2447
  %v2449 = vpop.f32.mrb[0].mxu0
  %2450 = vmatprep.mubr.f32.mxu0 0.0
  %v2451 = vand.u32 %v1306, 4294901760
  %2452 = vmatmul.mubr.f32.gmra.mrb[0].mxu0 %v2451
  %v2453 = vpop.f32.mrb[0].mxu0
  %v2454 = vadd.f32 %v2285, %v2453
  %v2455 = vpop.f32.mrb[0].mxu0
  %2456 = vmatprep.mubr.f32.mxu0 0.0
  %v2457 = vand.u32 %v1309, 4294901760
  %2458 = vmatmul.mubr.f32.gmra.mrb[0].mxu0 %v2457
  %v2459 = vpop.f32.mrb[0].mxu0
  %v2460 = vadd.f32 %v2291, %v2459
  %v2461 = vpop.f32.mrb[0].mxu0
  %2462 = vmatprep.mubr.f32.mxu0 0.0
  %v2463 = vand.u32 %v1312, 4294901760
  %2464 = vmatmul.mubr.f32.gmra.mrb[0].mxu0 %v2463
  %v2465 = vpop.f32.mrb[0].mxu0
  %v2466 = vadd.f32 %v2297, %v2465
  %v2467 = vpop.f32.mrb[0].mxu0
  %2468 = vmatprep.mubr.f32.mxu0 0.0
  %v2469 = vand.u32 %v1315, 4294901760
  %2470 = vmatmul.mubr.f32.gmra.mrb[0].mxu0 %v2469
  %v2471 = vpop.f32.mrb[0].mxu0
  %v2472 = vadd.f32 %v2303, %v2471
  %v2473 = vpop.f32.mrb[0].mxu0
  %2474 = vmatprep.mubr.f32.mxu0 0.0
  %v2475 = vand.u32 %v1318, 4294901760
  %2476 = vmatmul.mubr.f32.gmra.mrb[0].mxu0 %v2475
  %v2477 = vpop.f32.mrb[0].mxu0
  %v2478 = vadd.f32 %v2309, %v2477
  %v2479 = vpop.f32.mrb[0].mxu0
  %2480 = vmatprep.mubr.f32.mxu0 0.0
  %v2481 = vand.u32 %v1321, 4294901760
  %2482 = vmatmul.mubr.f32.gmra.mrb[0].mxu0 %v2481
  %v2483 = vpop.f32.mrb[0].mxu0
  %v2484 = vadd.f32 %v2315, %v2483
  %v2485 = vpop.f32.mrb[0].mxu0
  %2486 = vmatprep.mubr.f32.mxu0 0.0
  %v2487 = vand.u32 %v1324, 4294901760
  %2488 = vmatmul.mubr.f32.gmra.mrb[0].mxu0 %v2487
  %v2489 = vpop.f32.mrb[0].mxu0
  %v2490 = vadd.f32 %v2321, %v2489
  %v2491 = vpop.f32.mrb[0].mxu0
  %2492 = vmatprep.mubr.f32.mxu0 0.0
  %v2493 = vand.u32 %v1327, 4294901760
  %2494 = vmatmul.mubr.f32.gmra.mrb[0].mxu0 %v2493
  %v2495 = vpop.f32.mrb[0].mxu0
  %v2496 = vadd.f32 %v2327, %v2495
  %v2497 = vpop.f32.mrb[0].mxu0
  %2498 = vmatprep.mubr.f32.mxu0 0.0
  %v2499 = vand.u32 %v1330, 4294901760
  %2500 = vmatmul.mubr.f32.gmra.mrb[0].mxu0 %v2499
  %v2501 = vpop.f32.mrb[0].mxu0
  %v2502 = vadd.f32 %v2333, %v2501
  %v2503 = vpop.f32.mrb[0].mxu0
  %2504 = vmatprep.mubr.f32.mxu0 0.0
  %v2505 = vand.u32 %v1333, 4294901760
  %2506 = vmatmul.mubr.f32.gmra.mrb[0].mxu0 %v2505
  %v2507 = vpop.f32.mrb[0].mxu0
  %v2508 = vadd.f32 %v2339, %v2507
  %v2509 = vpop.f32.mrb[0].mxu0
  %2510 = vmatprep.mubr.f32.mxu0 0.0
  %v2511 = vand.u32 %v1336, 4294901760
  %2512 = vmatmul.mubr.f32.gmra.mrb[0].mxu0 %v2511
  %v2513 = vpop.f32.mrb[0].mxu0
  %v2514 = vadd.f32 %v2345, %v2513
  %v2515 = vpop.f32.mrb[0].mxu0
  %2516 = vmatprep.mubr.f32.mxu0 0.0
  %v2517 = vand.u32 %v1339, 4294901760
  %2518 = vmatmul.mubr.f32.gmra.mrb[0].mxu0 %v2517
  %v2519 = vpop.f32.mrb[0].mxu0
  %v2520 = vadd.f32 %v2351, %v2519
  %v2521 = vpop.f32.mrb[0].mxu0
  %2522 = vdwg.mxu0
  %v2523 = vtanh.pop %v2430
  %v2524 = vtanh.pop %v2436
  %v2525 = vtanh.pop %v2442
  %v2526 = vtanh.pop %v2448
  %v2527 = vtanh.pop %v2454
  %v2528 = vtanh.pop %v2460
  %v2529 = vtanh.pop %v2466
  %v2530 = vtanh.pop %v2472
  %v2531 = vtanh.pop %v2478
  %v2532 = vtanh.pop %v2484
  %v2533 = vtanh.pop %v2490
  %v2534 = vtanh.pop %v2496
  %v2535 = vtanh.pop %v2502
  %v2536 = vtanh.pop %v2508
  %v2537 = vtanh.pop %v2514
  %v2538 = vtanh.pop %v2520
  %vm2539 = vcmask 261120
  %2540 = vst.msk [vmem:[%s3] sm:$0xff] %vm2539, %v2523
  %2541 = vst.msk [vmem:[%s3 + $0x8] sm:$0xff] %vm2539, %v2524
  %2542 = vst.msk [vmem:[%s3 + $0x10] sm:$0xff] %vm2539, %v2525
  %2543 = vst.msk [vmem:[%s3 + $0x18] sm:$0xff] %vm2539, %v2526
  %2544 = vst.msk [vmem:[%s3 + $0x20] sm:$0xff] %vm2539, %v2527
  %2545 = vst.msk [vmem:[%s3 + $0x28] sm:$0xff] %vm2539, %v2528
  %2546 = vst.msk [vmem:[%s3 + $0x30] sm:$0xff] %vm2539, %v2529
  %2547 = vst.msk [vmem:[%s3 + $0x38] sm:$0xff] %vm2539, %v2530
  %2548 = vst.msk [vmem:[%s3 + $0x40] sm:$0xff] %vm2539, %v2531
  %2549 = vst.msk [vmem:[%s3 + $0x48] sm:$0xff] %vm2539, %v2532
  %2550 = vst.msk [vmem:[%s3 + $0x50] sm:$0xff] %vm2539, %v2533
  %2551 = vst.msk [vmem:[%s3 + $0x58] sm:$0xff] %vm2539, %v2534
  %2552 = vst.msk [vmem:[%s3 + $0x60] sm:$0xff] %vm2539, %v2535
  %2553 = vst.msk [vmem:[%s3 + $0x68] sm:$0xff] %vm2539, %v2536
  %2554 = vst.msk [vmem:[%s3 + $0x70] sm:$0xff] %vm2539, %v2537
  %2555 = vst.msk [vmem:[%s3 + $0x78] sm:$0xff] %vm2539, %v2538
  // Predicated region
  $region14: #{pairwise_dot.1} parent=0 // pred_check
    _
  $region15: #{pairwise_dot.1} parent=0 // pred_check_branch
    %2557 = sbr.rel (0) target = $region17
  $region16: #{pairwise_dot.1} parent=0 // pred_region
    _
  $region17: #{pairwise_dot.1} parent=0 // pred_fallthru
    _
  // Predicated region
  $region18: #{pairwise_dot.1} parent=0 // pred_check
    _
  $region19: #{pairwise_dot.1} parent=0 // pred_check_branch
    %2559 = sbr.rel (0) target = $region21
  $region20: #{pairwise_dot.1} parent=0 // pred_region
    _
  $region21: #{pairwise_dot.1} parent=0 // pred_fallthru
    _

</llo_original>
